<compile_context>
chip_gen: v6e
topology: v6e:2x2x1
jax: 0.10.0
libtpu: 0.0.40
codegen_flags: <defaults>
</compile_context>

<pallas_src>
import functools

import jax
import jax.numpy as jnp
from jax.experimental import pallas as pl
from jax.experimental.pallas import tpu as pltpu

BOTTLENECK_DIM = 5
IN_DIM = 28 * 28          # 784

# (in_features, out_features) for the 8 Linear layers, in forward order.
LAYER_DIMS = [
    (IN_DIM, 128), (128, 64), (64, 12), (12, BOTTLENECK_DIM),      # encoder
    (BOTTLENECK_DIM, 12), (12, 64), (64, 128), (128, IN_DIM),       # decoder
]


def _ae_kernel(x_ref,
               w1, b1, w2, b2, w3, b3, w45, b45,
               w6, b6, w7, b7, w8, b8,
               out_ref):
    """Whole autoencoder forward for one batch tile, entirely in VMEM."""

    def lin(h, w_ref, b_ref):
        # bf16 operands on the MXU, f32 accumulation, f32 bias add.
        return (jnp.dot(h.astype(jnp.bfloat16), w_ref[...],
                        preferred_element_type=jnp.float32)
                + b_ref[...])

    h = x_ref[...]                                    # (tile, 784), caller dtype
    # encoder
    h = jnp.maximum(lin(h, w1, b1), 0.0)
    h = jnp.maximum(lin(h, w2, b2), 0.0)
    h = jnp.maximum(lin(h, w3, b3), 0.0)
    # fused bottleneck pair (12->5->12, no activation in between), then ReLU
    h = jnp.maximum(lin(h, w45, b45), 0.0)
    # decoder tail
    h = jnp.maximum(lin(h, w6, b6), 0.0)
    h = jnp.maximum(lin(h, w7, b7), 0.0)
    out_ref[...] = jnp.tanh(lin(h, w8, b8)).astype(out_ref.dtype)


def _round_up(n, m):
    return (n + m - 1) // m * m


@functools.partial(jax.jit, static_argnames=("batch_tile", "out_dtype"))
def autoencoder_forward(x, params, *, batch_tile=512, out_dtype=jnp.bfloat16):
    """x: (B, 784) float. params: list of 8 (W, b) with W (in, out), b (1, out)."""
    B, D = x.shape
    assert D == IN_DIM
    assert batch_tile > 0 and batch_tile % 8 == 0

    # Tile selection:
    #   * big batches use batch_tile,
    #   * small batches get a single 8-aligned tile,
    #   * when the batch allows it, cap the tile so the (parallel) batch grid
    #     has >= 2 steps -> both v7x TensorCores get work.
    b_aligned = _round_up(B, 8)
    if b_aligned >= 16:
        tile = min(batch_tile, _round_up((b_aligned + 1) // 2, 8))
    else:
        tile = b_aligned
    B_pad = _round_up(B, tile)

    # Only batch rows are (zero-)padded; columns stay at 784 and the bf16 cast
    # happens inside the kernel — no extra wrapper-side HBM pass.
    x_p = x if B_pad == B else jnp.pad(x, ((0, B_pad - B), (0, 0)))

    # Fuse the bottleneck pair in f32, then cast everything for the MXU.
    ws = [w.astype(jnp.float32) for w, _ in params]
    bs = [b.astype(jnp.float32) for _, b in params]
    w45 = ws[3] @ ws[4]                 # (12, 12)
    b45 = bs[3] @ ws[4] + bs[4]         # (1, 12)
    eff = [(ws[0], bs[0]), (ws[1], bs[1]), (ws[2], bs[2]), (w45, b45),
           (ws[5], bs[5]), (ws[6], bs[6]), (ws[7], bs[7])]

    flat = []
    for w, b in eff:
        flat.append(w.astype(jnp.bfloat16))   # bf16 MXU operands
        flat.append(b)                        # f32 bias

    grid = (B_pad // tile,)

    # Streamed input tile + VMEM-resident weights/biases (constant index maps).
    in_specs = [pl.BlockSpec((tile, IN_DIM), lambda i: (i, 0))]
    for w, b in eff:
        in_specs.append(pl.BlockSpec(w.shape, lambda i: (0, 0)))
        in_specs.append(pl.BlockSpec(b.shape, lambda i: (0, 0)))

    out_spec = pl.BlockSpec((tile, IN_DIM), lambda i: (i, 0))

    out_itemsize = jnp.dtype(out_dtype).itemsize
    flops = 2 * B_pad * sum(w.shape[0] * w.shape[1] for w, _ in eff)
    weight_bytes = sum(w.size * 2 + b.size * 4 for w, b in eff)
    cost = pl.CostEstimate(
        flops=flops,
        transcendentals=B_pad * IN_DIM,                         # final tanh
        bytes_accessed=B_pad * IN_DIM * (x.dtype.itemsize + out_itemsize)
                       + weight_bytes,
    )

    out = pl.pallas_call(
        _ae_kernel,
        out_shape=jax.ShapeDtypeStruct((B_pad, IN_DIM), out_dtype),
        grid_spec=pltpu.PrefetchScalarGridSpec(
            num_scalar_prefetch=0,
            grid=grid,
            in_specs=in_specs,
            out_specs=out_spec,
        ),
        compiler_params=pltpu.CompilerParams(
            dimension_semantics=("parallel",),
        ),
        cost_estimate=cost,
    )(x_p, *flat)

    return out if B_pad == B else out[:B]


def init_params(key):
    """Deterministic synthetic init (PyTorch-style uniform fan-in bound)."""
    params = []
    for (din, dout) in LAYER_DIMS:
        key, kw, kb = jax.random.split(key, 3)
        bound = 1.0 / jnp.sqrt(float(din))
        w = jax.random.uniform(kw, (din, dout), jnp.float32, -bound, bound)
        b = jax.random.uniform(kb, (1, dout), jnp.float32, -bound, bound)
        params.append((w, b))
    return params


def reference_forward(x, params):
    """Pure-JAX f32 reference matching the original PyTorch module exactly
    (unfused layers, f32 math), for sanity checking."""
    h = x.astype(jnp.float32)
    for li, (w, b) in enumerate(params):
        h = h @ w.astype(jnp.float32) + b.astype(jnp.float32)
        if li in (0, 1, 2, 4, 5, 6):     # ReLU after all but bottleneck/final
            h = jnp.maximum(h, 0.0)
    return jnp.tanh(h)


if __name__ == "__main__":
    key = jax.random.PRNGKey(0)
    key, kx = jax.random.split(key)

    params = init_params(key)
    B = 32
    x = jax.random.normal(kx, (B, IN_DIM), jnp.float32)

    out = autoencoder_forward(x, params)
    out = jax.block_until_ready(out)

    ref = reference_forward(x, params)
    assert out.shape == (B, IN_DIM)

    out_f32 = out.astype(jnp.float32)
    max_err = jnp.max(jnp.abs(out_f32 - ref))
    # bf16 operands + bf16 output storage -> relaxed tolerance vs f32 reference.
    assert jnp.allclose(out_f32, ref, atol=3e-2, rtol=3e-2), (
        f"mismatch vs reference (max abs err {max_err})")

    print("KERNEL_OK")
</pallas_src>

<mosaic_0001>
module attributes {stable_mosaic.version = 11 : i64} {
  func.func @_ae_kernel(%arg0: i32, %arg1: memref<16x784xf32, #tpu.memory_space<vmem>>, %arg2: memref<784x128xbf16, #tpu.memory_space<vmem>>, %arg3: memref<1x128xf32, #tpu.memory_space<vmem>>, %arg4: memref<128x64xbf16, #tpu.memory_space<vmem>>, %arg5: memref<1x64xf32, #tpu.memory_space<vmem>>, %arg6: memref<64x12xbf16, #tpu.memory_space<vmem>>, %arg7: memref<1x12xf32, #tpu.memory_space<vmem>>, %arg8: memref<12x12xbf16, #tpu.memory_space<vmem>>, %arg9: memref<1x12xf32, #tpu.memory_space<vmem>>, %arg10: memref<12x64xbf16, #tpu.memory_space<vmem>>, %arg11: memref<1x64xf32, #tpu.memory_space<vmem>>, %arg12: memref<64x128xbf16, #tpu.memory_space<vmem>>, %arg13: memref<1x128xf32, #tpu.memory_space<vmem>>, %arg14: memref<128x784xbf16, #tpu.memory_space<vmem>>, %arg15: memref<1x784xf32, #tpu.memory_space<vmem>>, %arg16: memref<16x784xbf16, #tpu.memory_space<vmem>>) attributes {dimension_semantics = [#tpu.dimension_semantics<parallel>], iteration_bounds = array<i64: 2>, scalar_prefetch = 0 : i64, scratch_operands = 0 : i64, tpu.core_type = #tpu.core_type<tc>, window_params = [{transform_indices = @transform_0, window_bounds = array<i64: 16, 784>}, {pipeline_mode = #tpu.pipeline_mode<synchronous>, transform_indices = @transform_1, window_bounds = array<i64: 784, 128>}, {pipeline_mode = #tpu.pipeline_mode<synchronous>, transform_indices = @transform_2, window_bounds = array<i64: 1, 128>}, {pipeline_mode = #tpu.pipeline_mode<synchronous>, transform_indices = @transform_3, window_bounds = array<i64: 128, 64>}, {pipeline_mode = #tpu.pipeline_mode<synchronous>, transform_indices = @transform_4, window_bounds = array<i64: 1, 64>}, {pipeline_mode = #tpu.pipeline_mode<synchronous>, transform_indices = @transform_5, window_bounds = array<i64: 64, 12>}, {pipeline_mode = #tpu.pipeline_mode<synchronous>, transform_indices = @transform_6, window_bounds = array<i64: 1, 12>}, {pipeline_mode = #tpu.pipeline_mode<synchronous>, transform_indices = @transform_7, window_bounds = array<i64: 12, 12>}, {pipeline_mode = #tpu.pipeline_mode<synchronous>, transform_indices = @transform_8, window_bounds = array<i64: 1, 12>}, {pipeline_mode = #tpu.pipeline_mode<synchronous>, transform_indices = @transform_9, window_bounds = array<i64: 12, 64>}, {pipeline_mode = #tpu.pipeline_mode<synchronous>, transform_indices = @transform_10, window_bounds = array<i64: 1, 64>}, {pipeline_mode = #tpu.pipeline_mode<synchronous>, transform_indices = @transform_11, window_bounds = array<i64: 64, 128>}, {pipeline_mode = #tpu.pipeline_mode<synchronous>, transform_indices = @transform_12, window_bounds = array<i64: 1, 128>}, {pipeline_mode = #tpu.pipeline_mode<synchronous>, transform_indices = @transform_13, window_bounds = array<i64: 128, 784>}, {pipeline_mode = #tpu.pipeline_mode<synchronous>, transform_indices = @transform_14, window_bounds = array<i64: 1, 784>}, {transform_indices = @transform_15, window_bounds = array<i64: 16, 784>}]} {
    %c0 = arith.constant 0 : index
    %c0_0 = arith.constant 0 : index
    %0 = vector.load %arg1[%c0, %c0_0] : memref<16x784xf32, #tpu.memory_space<vmem>>, vector<16x784xf32>
    %1 = arith.truncf %0 : vector<16x784xf32> to vector<16x784xbf16>
    %c0_1 = arith.constant 0 : index
    %c0_2 = arith.constant 0 : index
    %2 = vector.load %arg2[%c0_1, %c0_2] : memref<784x128xbf16, #tpu.memory_space<vmem>>, vector<784x128xbf16>
    %cst = arith.constant dense<0.000000e+00> : vector<16x128xf32>
    %3 = tpu.matmul %1, %2, %cst {dimension_numbers = #tpu.dot_dimension_numbers<[1], [0], [0], [1], [0, 0, 1, 1], [], []>} : vector<16x784xbf16>, vector<784x128xbf16>, vector<16x128xf32> -> vector<16x128xf32>
    %c0_3 = arith.constant 0 : index
    %c0_4 = arith.constant 0 : index
    %4 = vector.load %arg3[%c0_3, %c0_4] : memref<1x128xf32, #tpu.memory_space<vmem>>, vector<1x128xf32>
    %5 = vector.broadcast %4 : vector<1x128xf32> to vector<16x128xf32>
    %6 = arith.addf %3, %5 : vector<16x128xf32>
    %cst_5 = arith.constant 0.000000e+00 : f32
    %7 = vector.broadcast %cst_5 : f32 to vector<16x128xf32>
    %8 = arith.maximumf %6, %7 : vector<16x128xf32>
    %9 = arith.truncf %8 : vector<16x128xf32> to vector<16x128xbf16>
    %c0_6 = arith.constant 0 : index
    %c0_7 = arith.constant 0 : index
    %10 = vector.load %arg4[%c0_6, %c0_7] : memref<128x64xbf16, #tpu.memory_space<vmem>>, vector<128x64xbf16>
    %cst_8 = arith.constant dense<0.000000e+00> : vector<16x64xf32>
    %11 = tpu.matmul %9, %10, %cst_8 {dimension_numbers = #tpu.dot_dimension_numbers<[1], [0], [0], [1], [0, 0, 1, 1], [], []>} : vector<16x128xbf16>, vector<128x64xbf16>, vector<16x64xf32> -> vector<16x64xf32>
    %c0_9 = arith.constant 0 : index
    %c0_10 = arith.constant 0 : index
    %12 = vector.load %arg5[%c0_9, %c0_10] : memref<1x64xf32, #tpu.memory_space<vmem>>, vector<1x64xf32>
    %13 = vector.broadcast %12 : vector<1x64xf32> to vector<16x64xf32>
    %14 = arith.addf %11, %13 : vector<16x64xf32>
    %cst_11 = arith.constant 0.000000e+00 : f32
    %15 = vector.broadcast %cst_11 : f32 to vector<16x64xf32>
    %16 = arith.maximumf %14, %15 : vector<16x64xf32>
    %17 = arith.truncf %16 : vector<16x64xf32> to vector<16x64xbf16>
    %c0_12 = arith.constant 0 : index
    %c0_13 = arith.constant 0 : index
    %18 = vector.load %arg6[%c0_12, %c0_13] : memref<64x12xbf16, #tpu.memory_space<vmem>>, vector<64x12xbf16>
    %cst_14 = arith.constant dense<0.000000e+00> : vector<16x12xf32>
    %19 = tpu.matmul %17, %18, %cst_14 {dimension_numbers = #tpu.dot_dimension_numbers<[1], [0], [0], [1], [0, 0, 1, 1], [], []>} : vector<16x64xbf16>, vector<64x12xbf16>, vector<16x12xf32> -> vector<16x12xf32>
    %c0_15 = arith.constant 0 : index
    %c0_16 = arith.constant 0 : index
    %20 = vector.load %arg7[%c0_15, %c0_16] : memref<1x12xf32, #tpu.memory_space<vmem>>, vector<1x12xf32>
    %21 = vector.broadcast %20 : vector<1x12xf32> to vector<16x12xf32>
    %22 = arith.addf %19, %21 : vector<16x12xf32>
    %cst_17 = arith.constant 0.000000e+00 : f32
    %23 = vector.broadcast %cst_17 : f32 to vector<16x12xf32>
    %24 = arith.maximumf %22, %23 : vector<16x12xf32>
    %25 = arith.truncf %24 : vector<16x12xf32> to vector<16x12xbf16>
    %c0_18 = arith.constant 0 : index
    %c0_19 = arith.constant 0 : index
    %26 = vector.load %arg8[%c0_18, %c0_19] : memref<12x12xbf16, #tpu.memory_space<vmem>>, vector<12x12xbf16>
    %cst_20 = arith.constant dense<0.000000e+00> : vector<16x12xf32>
    %27 = tpu.matmul %25, %26, %cst_20 {dimension_numbers = #tpu.dot_dimension_numbers<[1], [0], [0], [1], [0, 0, 1, 1], [], []>} : vector<16x12xbf16>, vector<12x12xbf16>, vector<16x12xf32> -> vector<16x12xf32>
    %c0_21 = arith.constant 0 : index
    %c0_22 = arith.constant 0 : index
    %28 = vector.load %arg9[%c0_21, %c0_22] : memref<1x12xf32, #tpu.memory_space<vmem>>, vector<1x12xf32>
    %29 = vector.broadcast %28 : vector<1x12xf32> to vector<16x12xf32>
    %30 = arith.addf %27, %29 : vector<16x12xf32>
    %cst_23 = arith.constant 0.000000e+00 : f32
    %31 = vector.broadcast %cst_23 : f32 to vector<16x12xf32>
    %32 = arith.maximumf %30, %31 : vector<16x12xf32>
    %33 = arith.truncf %32 : vector<16x12xf32> to vector<16x12xbf16>
    %c0_24 = arith.constant 0 : index
    %c0_25 = arith.constant 0 : index
    %34 = vector.load %arg10[%c0_24, %c0_25] : memref<12x64xbf16, #tpu.memory_space<vmem>>, vector<12x64xbf16>
    %cst_26 = arith.constant dense<0.000000e+00> : vector<16x64xf32>
    %35 = tpu.matmul %33, %34, %cst_26 {dimension_numbers = #tpu.dot_dimension_numbers<[1], [0], [0], [1], [0, 0, 1, 1], [], []>} : vector<16x12xbf16>, vector<12x64xbf16>, vector<16x64xf32> -> vector<16x64xf32>
    %c0_27 = arith.constant 0 : index
    %c0_28 = arith.constant 0 : index
    %36 = vector.load %arg11[%c0_27, %c0_28] : memref<1x64xf32, #tpu.memory_space<vmem>>, vector<1x64xf32>
    %37 = vector.broadcast %36 : vector<1x64xf32> to vector<16x64xf32>
    %38 = arith.addf %35, %37 : vector<16x64xf32>
    %cst_29 = arith.constant 0.000000e+00 : f32
    %39 = vector.broadcast %cst_29 : f32 to vector<16x64xf32>
    %40 = arith.maximumf %38, %39 : vector<16x64xf32>
    %41 = arith.truncf %40 : vector<16x64xf32> to vector<16x64xbf16>
    %c0_30 = arith.constant 0 : index
    %c0_31 = arith.constant 0 : index
    %42 = vector.load %arg12[%c0_30, %c0_31] : memref<64x128xbf16, #tpu.memory_space<vmem>>, vector<64x128xbf16>
    %cst_32 = arith.constant dense<0.000000e+00> : vector<16x128xf32>
    %43 = tpu.matmul %41, %42, %cst_32 {dimension_numbers = #tpu.dot_dimension_numbers<[1], [0], [0], [1], [0, 0, 1, 1], [], []>} : vector<16x64xbf16>, vector<64x128xbf16>, vector<16x128xf32> -> vector<16x128xf32>
    %c0_33 = arith.constant 0 : index
    %c0_34 = arith.constant 0 : index
    %44 = vector.load %arg13[%c0_33, %c0_34] : memref<1x128xf32, #tpu.memory_space<vmem>>, vector<1x128xf32>
    %45 = vector.broadcast %44 : vector<1x128xf32> to vector<16x128xf32>
    %46 = arith.addf %43, %45 : vector<16x128xf32>
    %cst_35 = arith.constant 0.000000e+00 : f32
    %47 = vector.broadcast %cst_35 : f32 to vector<16x128xf32>
    %48 = arith.maximumf %46, %47 : vector<16x128xf32>
    %49 = arith.truncf %48 : vector<16x128xf32> to vector<16x128xbf16>
    %c0_36 = arith.constant 0 : index
    %c0_37 = arith.constant 0 : index
    %50 = vector.load %arg14[%c0_36, %c0_37] : memref<128x784xbf16, #tpu.memory_space<vmem>>, vector<128x784xbf16>
    %cst_38 = arith.constant dense<0.000000e+00> : vector<16x784xf32>
    %51 = tpu.matmul %49, %50, %cst_38 {dimension_numbers = #tpu.dot_dimension_numbers<[1], [0], [0], [1], [0, 0, 1, 1], [], []>} : vector<16x128xbf16>, vector<128x784xbf16>, vector<16x784xf32> -> vector<16x784xf32>
    %c0_39 = arith.constant 0 : index
    %c0_40 = arith.constant 0 : index
    %52 = vector.load %arg15[%c0_39, %c0_40] : memref<1x784xf32, #tpu.memory_space<vmem>>, vector<1x784xf32>
    %53 = vector.broadcast %52 : vector<1x784xf32> to vector<16x784xf32>
    %54 = arith.addf %51, %53 : vector<16x784xf32>
    %55 = math.tanh %54 : vector<16x784xf32>
    %56 = arith.truncf %55 : vector<16x784xf32> to vector<16x784xbf16>
    %c0_41 = arith.constant 0 : index
    %c0_42 = arith.constant 0 : index
    %57 = vector.load %arg16[%c0_41, %c0_42] : memref<16x784xbf16, #tpu.memory_space<vmem>>, vector<16x784xbf16>
    tpu.vector_store %arg16[%c0_41, %c0_42], %56 {strides = array<i32>} : memref<16x784xbf16, #tpu.memory_space<vmem>>, vector<16x784xbf16>,
    return
  }
  func.func @transform_0(%arg0: i32) -> (i32, i32) {
    %c0_i32 = arith.constant 0 : i32
    %c0_i32_0 = arith.constant 0 : i32
    return %arg0, %c0_i32 : i32, i32
  }
  func.func @transform_1(%arg0: i32) -> (i32, i32) {
    %c0_i32 = arith.constant 0 : i32
    %c0_i32_0 = arith.constant 0 : i32
    %c0_i32_1 = arith.constant 0 : i32
    return %c0_i32, %c0_i32_0 : i32, i32
  }
  func.func @transform_2(%arg0: i32) -> (i32, i32) {
    %c0_i32 = arith.constant 0 : i32
    %c0_i32_0 = arith.constant 0 : i32
    %c0_i32_1 = arith.constant 0 : i32
    return %c0_i32, %c0_i32_0 : i32, i32
  }
  func.func @transform_3(%arg0: i32) -> (i32, i32) {
    %c0_i32 = arith.constant 0 : i32
    %c0_i32_0 = arith.constant 0 : i32
    %c0_i32_1 = arith.constant 0 : i32
    return %c0_i32, %c0_i32_0 : i32, i32
  }
  func.func @transform_4(%arg0: i32) -> (i32, i32) {
    %c0_i32 = arith.constant 0 : i32
    %c0_i32_0 = arith.constant 0 : i32
    %c0_i32_1 = arith.constant 0 : i32
    return %c0_i32, %c0_i32_0 : i32, i32
  }
  func.func @transform_5(%arg0: i32) -> (i32, i32) {
    %c0_i32 = arith.constant 0 : i32
    %c0_i32_0 = arith.constant 0 : i32
    %c0_i32_1 = arith.constant 0 : i32
    return %c0_i32, %c0_i32_0 : i32, i32
  }
  func.func @transform_6(%arg0: i32) -> (i32, i32) {
    %c0_i32 = arith.constant 0 : i32
    %c0_i32_0 = arith.constant 0 : i32
    %c0_i32_1 = arith.constant 0 : i32
    return %c0_i32, %c0_i32_0 : i32, i32
  }
  func.func @transform_7(%arg0: i32) -> (i32, i32) {
    %c0_i32 = arith.constant 0 : i32
    %c0_i32_0 = arith.constant 0 : i32
    %c0_i32_1 = arith.constant 0 : i32
    return %c0_i32, %c0_i32_0 : i32, i32
  }
  func.func @transform_8(%arg0: i32) -> (i32, i32) {
    %c0_i32 = arith.constant 0 : i32
    %c0_i32_0 = arith.constant 0 : i32
    %c0_i32_1 = arith.constant 0 : i32
    return %c0_i32, %c0_i32_0 : i32, i32
  }
  func.func @transform_9(%arg0: i32) -> (i32, i32) {
    %c0_i32 = arith.constant 0 : i32
    %c0_i32_0 = arith.constant 0 : i32
    %c0_i32_1 = arith.constant 0 : i32
    return %c0_i32, %c0_i32_0 : i32, i32
  }
  func.func @transform_10(%arg0: i32) -> (i32, i32) {
    %c0_i32 = arith.constant 0 : i32
    %c0_i32_0 = arith.constant 0 : i32
    %c0_i32_1 = arith.constant 0 : i32
    return %c0_i32, %c0_i32_0 : i32, i32
  }
  func.func @transform_11(%arg0: i32) -> (i32, i32) {
    %c0_i32 = arith.constant 0 : i32
    %c0_i32_0 = arith.constant 0 : i32
    %c0_i32_1 = arith.constant 0 : i32
    return %c0_i32, %c0_i32_0 : i32, i32
  }
  func.func @transform_12(%arg0: i32) -> (i32, i32) {
    %c0_i32 = arith.constant 0 : i32
    %c0_i32_0 = arith.constant 0 : i32
    %c0_i32_1 = arith.constant 0 : i32
    return %c0_i32, %c0_i32_0 : i32, i32
  }
  func.func @transform_13(%arg0: i32) -> (i32, i32) {
    %c0_i32 = arith.constant 0 : i32
    %c0_i32_0 = arith.constant 0 : i32
    %c0_i32_1 = arith.constant 0 : i32
    return %c0_i32, %c0_i32_0 : i32, i32
  }
  func.func @transform_14(%arg0: i32) -> (i32, i32) {
    %c0_i32 = arith.constant 0 : i32
    %c0_i32_0 = arith.constant 0 : i32
    %c0_i32_1 = arith.constant 0 : i32
    return %c0_i32, %c0_i32_0 : i32, i32
  }
  func.func @transform_15(%arg0: i32) -> (i32, i32) {
    %c0_i32 = arith.constant 0 : i32
    %c0_i32_0 = arith.constant 0 : i32
    return %arg0, %c0_i32 : i32, i32
  }
}

</mosaic_0001>

<llo_original>
// kernel: autoencoder_forward.1
$region0: #{autoencoder_forward.1}
  #allocation0 [shape = 'u32[]', space=smem, size = 0x4, offset = 0x4, fixed_abs, tag = 'smem constant byte address 0x4 - core index']
  #allocation1 [shape = 'u32[144,128]{1,0:T(1,128)}', space=vmem, size = 0x12000, scoped, tag = 'internal scratch']
  %s0 = inlined_call_operand.vmem [shape: f32[32,784], index: 0, kind: input, shape index: {}]
  %s1 = inlined_call_operand.vmem [shape: bf16[784,128], index: 1, kind: input, shape index: {}]
  %s2 = inlined_call_operand.vmem [shape: f32[1,128], index: 2, kind: input, shape index: {}]
  %s3 = inlined_call_operand.vmem [shape: bf16[128,64], index: 3, kind: input, shape index: {}]
  %s4 = inlined_call_operand.vmem [shape: f32[1,64], index: 4, kind: input, shape index: {}]
  %s5 = inlined_call_operand.vmem [shape: bf16[64,12], index: 5, kind: input, shape index: {}]
  %s6 = inlined_call_operand.vmem [shape: f32[1,12], index: 6, kind: input, shape index: {}]
  %s7 = inlined_call_operand.vmem [shape: bf16[12,12], index: 7, kind: input, shape index: {}]
  %s8 = inlined_call_operand.vmem [shape: f32[1,12], index: 8, kind: input, shape index: {}]
  %s9 = inlined_call_operand.vmem [shape: bf16[12,64], index: 9, kind: input, shape index: {}]
  %s10 = inlined_call_operand.vmem [shape: f32[1,64], index: 10, kind: input, shape index: {}]
  %s11 = inlined_call_operand.vmem [shape: bf16[64,128], index: 11, kind: input, shape index: {}]
  %s12 = inlined_call_operand.vmem [shape: f32[1,128], index: 12, kind: input, shape index: {}]
  %s13 = inlined_call_operand.vmem [shape: bf16[128,784], index: 13, kind: input, shape index: {}]
  %s14 = inlined_call_operand.vmem [shape: f32[1,784], index: 14, kind: input, shape index: {}]
  %s15 = inlined_call_operand.hbm [shape: bf16[32,784], index: 15, kind: output, shape index: {}]
  %s16 = sld [smem:[#allocation0]]
  $region93: #{autoencoder_forward.1} parent=0
    _
  %s18 = ssub.s32 1, %s16
  %s19 = scalar_select 0, %s18, %s16
  $region1: #{autoencoder_forward.1} parent=0
    #allocation2 [shape = 'u8[57344]{0}', space=vmem, size = 0xe000, scoped, tag = 'output window, operand 0']
    #allocation3 [shape = 's32[2]{0}', space=sflag, size = 0x8, scoped, tag = 'scoped memory for autoencoder_forward.1']
    %20 = vsyncpa [#allocation3], 0
    %s21 = scalar_lea.sflag [#allocation3], 1
    %22 = vsyncpa %s21, 0
    loop: start=0, step=1, limit=4
    $region2: #{autoencoder_forward.1} parent=1 // loop_pre_header
      _
    $region3: #{autoencoder_forward.1} parent=1 // loop_header
      %s24 = sphi 0, %s28
      %p25 = scmp.ge.s32.totalorder %s24, 4
      %s34 = sphi 0, %s36
      %s37 = sphi 0, %s34
      %s38 = sphi 0, %s37
      %s54 = sphi 0, %s38
      %s58 = sphi 0, %s58
      %s60 = sphi 0, %s58
      %s61 = sphi 0, %s60
      %s75 = sphi 0, %s61
      %s79 = sphi 0, %s79
      %s81 = sphi 0, %s79
      %s82 = sphi 0, %s81
      %s96 = sphi 0, %s82
      %s100 = sphi 0, %s100
      %s102 = sphi 0, %s100
      %s103 = sphi 0, %s102
      %s117 = sphi 0, %s103
      %s121 = sphi 0, %s121
      %s123 = sphi 0, %s121
      %s124 = sphi 0, %s123
      %s138 = sphi 0, %s124
      %s142 = sphi 0, %s142
      %s144 = sphi 0, %s142
      %s145 = sphi 0, %s144
      %s159 = sphi 0, %s145
      %s163 = sphi 0, %s163
      %s165 = sphi 0, %s163
      %s166 = sphi 0, %s165
      %s180 = sphi 0, %s166
      %s184 = sphi 0, %s184
      %s186 = sphi 0, %s184
      %s187 = sphi 0, %s186
      %s201 = sphi 0, %s187
      %s205 = sphi 0, %s205
      %s207 = sphi 0, %s205
      %s208 = sphi 0, %s207
      %s222 = sphi 0, %s208
      %s226 = sphi 0, %s226
      %s228 = sphi 0, %s226
      %s229 = sphi 0, %s228
      %s243 = sphi 0, %s229
      %s247 = sphi 0, %s247
      %s249 = sphi 0, %s247
      %s250 = sphi 0, %s249
      %s264 = sphi 0, %s250
      %s268 = sphi 0, %s268
      %s270 = sphi 0, %s268
      %s271 = sphi 0, %s270
      %s285 = sphi 0, %s271
      %s289 = sphi 0, %s289
      %s291 = sphi 0, %s289
      %s292 = sphi 0, %s291
      %s306 = sphi 0, %s292
      %s310 = sphi 0, %s310
      %s312 = sphi 0, %s310
      %s313 = sphi 0, %s312
      %s327 = sphi 0, %s313
      %s331 = sphi 0, %s331
      %s333 = sphi 0, %s331
      %s334 = sphi 0, %s333
      %s348 = sphi 0, %s334
      %s354 = sphi 0, %s356
      %s357 = sphi 0, %s354
      %s358 = sphi 0, %s357
      %s374 = sphi 0, %s358
    $region4: #{autoencoder_forward.1} parent=1 // loop_header_branch
      %27 = sbr.rel (%p25) target = $region8
    $region5: #{autoencoder_forward.1} parent=1 // loop_body
      %s29 = ssub.s32 %s24, 1
      %s30 = ssub.s32 %s24, 2
      %s31 = sadd.s32 %s24, 1
      %s32 = ssub.s32 %s24, %s31
      %p33 = scmp.eq.s32.totalorder %s32, 0
      %s35 = sadd.s32 %s34, 1
      %s36 = scalar_select %p33, %s34, %s35
      %p39 = pneg %p33
      %p40 = scmp.eq.s32.totalorder %s24, 1
      %p41 = por %p39, %p40
      %p42 = scmp.ne.s32.totalorder %s34, %s37
      %p43 = scmp.eq.s32.totalorder %s24, 0
      %p44 = por %p42, %p43
      %p45 = scmp.ne.s32.totalorder %s34, %s37
      %p46 = scmp.eq.s32.totalorder %s29, 1
      %p47 = por %p45, %p46
      %p48 = scmp.ne.s32.totalorder %s37, %s38
      %p49 = scmp.eq.s32.totalorder %s29, 0
      %p50 = por %p48, %p49
      %p51 = scmp.ne.s32.totalorder %s37, %s38
      %p52 = scmp.eq.s32.totalorder %s30, 1
      %p53 = por %p51, %p52
      %p55 = scmp.ne.s32.totalorder %s38, %s54
      %p56 = scmp.eq.s32.totalorder %s30, 0
      %p57 = por %p55, %p56
      %s59 = sadd.s32 %s58, 1
      %p62 = scmp.eq.s32.totalorder %s24, 1
      %p63 = scmp.ne.s32.totalorder %s58, %s60
      %p64 = scmp.eq.s32.totalorder %s24, 0
      %p65 = por %p63, %p64
      %p66 = scmp.ne.s32.totalorder %s58, %s60
      %p67 = scmp.eq.s32.totalorder %s29, 1
      %p68 = por %p66, %p67
      %p69 = scmp.ne.s32.totalorder %s60, %s61
      %p70 = scmp.eq.s32.totalorder %s29, 0
      %p71 = por %p69, %p70
      %p72 = scmp.ne.s32.totalorder %s60, %s61
      %p73 = scmp.eq.s32.totalorder %s30, 1
      %p74 = por %p72, %p73
      %p76 = scmp.ne.s32.totalorder %s61, %s75
      %p77 = scmp.eq.s32.totalorder %s30, 0
      %p78 = por %p76, %p77
      %s80 = sadd.s32 %s79, 1
      %p83 = scmp.eq.s32.totalorder %s24, 1
      %p84 = scmp.ne.s32.totalorder %s79, %s81
      %p85 = scmp.eq.s32.totalorder %s24, 0
      %p86 = por %p84, %p85
      %p87 = scmp.ne.s32.totalorder %s79, %s81
      %p88 = scmp.eq.s32.totalorder %s29, 1
      %p89 = por %p87, %p88
      %p90 = scmp.ne.s32.totalorder %s81, %s82
      %p91 = scmp.eq.s32.totalorder %s29, 0
      %p92 = por %p90, %p91
      %p93 = scmp.ne.s32.totalorder %s81, %s82
      %p94 = scmp.eq.s32.totalorder %s30, 1
      %p95 = por %p93, %p94
      %p97 = scmp.ne.s32.totalorder %s82, %s96
      %p98 = scmp.eq.s32.totalorder %s30, 0
      %p99 = por %p97, %p98
      %s101 = sadd.s32 %s100, 1
      %p104 = scmp.eq.s32.totalorder %s24, 1
      %p105 = scmp.ne.s32.totalorder %s100, %s102
      %p106 = scmp.eq.s32.totalorder %s24, 0
      %p107 = por %p105, %p106
      %p108 = scmp.ne.s32.totalorder %s100, %s102
      %p109 = scmp.eq.s32.totalorder %s29, 1
      %p110 = por %p108, %p109
      %p111 = scmp.ne.s32.totalorder %s102, %s103
      %p112 = scmp.eq.s32.totalorder %s29, 0
      %p113 = por %p111, %p112
      %p114 = scmp.ne.s32.totalorder %s102, %s103
      %p115 = scmp.eq.s32.totalorder %s30, 1
      %p116 = por %p114, %p115
      %p118 = scmp.ne.s32.totalorder %s103, %s117
      %p119 = scmp.eq.s32.totalorder %s30, 0
      %p120 = por %p118, %p119
      %s122 = sadd.s32 %s121, 1
      %p125 = scmp.eq.s32.totalorder %s24, 1
      %p126 = scmp.ne.s32.totalorder %s121, %s123
      %p127 = scmp.eq.s32.totalorder %s24, 0
      %p128 = por %p126, %p127
      %p129 = scmp.ne.s32.totalorder %s121, %s123
      %p130 = scmp.eq.s32.totalorder %s29, 1
      %p131 = por %p129, %p130
      %p132 = scmp.ne.s32.totalorder %s123, %s124
      %p133 = scmp.eq.s32.totalorder %s29, 0
      %p134 = por %p132, %p133
      %p135 = scmp.ne.s32.totalorder %s123, %s124
      %p136 = scmp.eq.s32.totalorder %s30, 1
      %p137 = por %p135, %p136
      %p139 = scmp.ne.s32.totalorder %s124, %s138
      %p140 = scmp.eq.s32.totalorder %s30, 0
      %p141 = por %p139, %p140
      %s143 = sadd.s32 %s142, 1
      %p146 = scmp.eq.s32.totalorder %s24, 1
      %p147 = scmp.ne.s32.totalorder %s142, %s144
      %p148 = scmp.eq.s32.totalorder %s24, 0
      %p149 = por %p147, %p148
      %p150 = scmp.ne.s32.totalorder %s142, %s144
      %p151 = scmp.eq.s32.totalorder %s29, 1
      %p152 = por %p150, %p151
      %p153 = scmp.ne.s32.totalorder %s144, %s145
      %p154 = scmp.eq.s32.totalorder %s29, 0
      %p155 = por %p153, %p154
      %p156 = scmp.ne.s32.totalorder %s144, %s145
      %p157 = scmp.eq.s32.totalorder %s30, 1
      %p158 = por %p156, %p157
      %p160 = scmp.ne.s32.totalorder %s145, %s159
      %p161 = scmp.eq.s32.totalorder %s30, 0
      %p162 = por %p160, %p161
      %s164 = sadd.s32 %s163, 1
      %p167 = scmp.eq.s32.totalorder %s24, 1
      %p168 = scmp.ne.s32.totalorder %s163, %s165
      %p169 = scmp.eq.s32.totalorder %s24, 0
      %p170 = por %p168, %p169
      %p171 = scmp.ne.s32.totalorder %s163, %s165
      %p172 = scmp.eq.s32.totalorder %s29, 1
      %p173 = por %p171, %p172
      %p174 = scmp.ne.s32.totalorder %s165, %s166
      %p175 = scmp.eq.s32.totalorder %s29, 0
      %p176 = por %p174, %p175
      %p177 = scmp.ne.s32.totalorder %s165, %s166
      %p178 = scmp.eq.s32.totalorder %s30, 1
      %p179 = por %p177, %p178
      %p181 = scmp.ne.s32.totalorder %s166, %s180
      %p182 = scmp.eq.s32.totalorder %s30, 0
      %p183 = por %p181, %p182
      %s185 = sadd.s32 %s184, 1
      %p188 = scmp.eq.s32.totalorder %s24, 1
      %p189 = scmp.ne.s32.totalorder %s184, %s186
      %p190 = scmp.eq.s32.totalorder %s24, 0
      %p191 = por %p189, %p190
      %p192 = scmp.ne.s32.totalorder %s184, %s186
      %p193 = scmp.eq.s32.totalorder %s29, 1
      %p194 = por %p192, %p193
      %p195 = scmp.ne.s32.totalorder %s186, %s187
      %p196 = scmp.eq.s32.totalorder %s29, 0
      %p197 = por %p195, %p196
      %p198 = scmp.ne.s32.totalorder %s186, %s187
      %p199 = scmp.eq.s32.totalorder %s30, 1
      %p200 = por %p198, %p199
      %p202 = scmp.ne.s32.totalorder %s187, %s201
      %p203 = scmp.eq.s32.totalorder %s30, 0
      %p204 = por %p202, %p203
      %s206 = sadd.s32 %s205, 1
      %p209 = scmp.eq.s32.totalorder %s24, 1
      %p210 = scmp.ne.s32.totalorder %s205, %s207
      %p211 = scmp.eq.s32.totalorder %s24, 0
      %p212 = por %p210, %p211
      %p213 = scmp.ne.s32.totalorder %s205, %s207
      %p214 = scmp.eq.s32.totalorder %s29, 1
      %p215 = por %p213, %p214
      %p216 = scmp.ne.s32.totalorder %s207, %s208
      %p217 = scmp.eq.s32.totalorder %s29, 0
      %p218 = por %p216, %p217
      %p219 = scmp.ne.s32.totalorder %s207, %s208
      %p220 = scmp.eq.s32.totalorder %s30, 1
      %p221 = por %p219, %p220
      %p223 = scmp.ne.s32.totalorder %s208, %s222
      %p224 = scmp.eq.s32.totalorder %s30, 0
      %p225 = por %p223, %p224
      %s227 = sadd.s32 %s226, 1
      %p230 = scmp.eq.s32.totalorder %s24, 1
      %p231 = scmp.ne.s32.totalorder %s226, %s228
      %p232 = scmp.eq.s32.totalorder %s24, 0
      %p233 = por %p231, %p232
      %p234 = scmp.ne.s32.totalorder %s226, %s228
      %p235 = scmp.eq.s32.totalorder %s29, 1
      %p236 = por %p234, %p235
      %p237 = scmp.ne.s32.totalorder %s228, %s229
      %p238 = scmp.eq.s32.totalorder %s29, 0
      %p239 = por %p237, %p238
      %p240 = scmp.ne.s32.totalorder %s228, %s229
      %p241 = scmp.eq.s32.totalorder %s30, 1
      %p242 = por %p240, %p241
      %p244 = scmp.ne.s32.totalorder %s229, %s243
      %p245 = scmp.eq.s32.totalorder %s30, 0
      %p246 = por %p244, %p245
      %s248 = sadd.s32 %s247, 1
      %p251 = scmp.eq.s32.totalorder %s24, 1
      %p252 = scmp.ne.s32.totalorder %s247, %s249
      %p253 = scmp.eq.s32.totalorder %s24, 0
      %p254 = por %p252, %p253
      %p255 = scmp.ne.s32.totalorder %s247, %s249
      %p256 = scmp.eq.s32.totalorder %s29, 1
      %p257 = por %p255, %p256
      %p258 = scmp.ne.s32.totalorder %s249, %s250
      %p259 = scmp.eq.s32.totalorder %s29, 0
      %p260 = por %p258, %p259
      %p261 = scmp.ne.s32.totalorder %s249, %s250
      %p262 = scmp.eq.s32.totalorder %s30, 1
      %p263 = por %p261, %p262
      %p265 = scmp.ne.s32.totalorder %s250, %s264
      %p266 = scmp.eq.s32.totalorder %s30, 0
      %p267 = por %p265, %p266
      %s269 = sadd.s32 %s268, 1
      %p272 = scmp.eq.s32.totalorder %s24, 1
      %p273 = scmp.ne.s32.totalorder %s268, %s270
      %p274 = scmp.eq.s32.totalorder %s24, 0
      %p275 = por %p273, %p274
      %p276 = scmp.ne.s32.totalorder %s268, %s270
      %p277 = scmp.eq.s32.totalorder %s29, 1
      %p278 = por %p276, %p277
      %p279 = scmp.ne.s32.totalorder %s270, %s271
      %p280 = scmp.eq.s32.totalorder %s29, 0
      %p281 = por %p279, %p280
      %p282 = scmp.ne.s32.totalorder %s270, %s271
      %p283 = scmp.eq.s32.totalorder %s30, 1
      %p284 = por %p282, %p283
      %p286 = scmp.ne.s32.totalorder %s271, %s285
      %p287 = scmp.eq.s32.totalorder %s30, 0
      %p288 = por %p286, %p287
      %s290 = sadd.s32 %s289, 1
      %p293 = scmp.eq.s32.totalorder %s24, 1
      %p294 = scmp.ne.s32.totalorder %s289, %s291
      %p295 = scmp.eq.s32.totalorder %s24, 0
      %p296 = por %p294, %p295
      %p297 = scmp.ne.s32.totalorder %s289, %s291
      %p298 = scmp.eq.s32.totalorder %s29, 1
      %p299 = por %p297, %p298
      %p300 = scmp.ne.s32.totalorder %s291, %s292
      %p301 = scmp.eq.s32.totalorder %s29, 0
      %p302 = por %p300, %p301
      %p303 = scmp.ne.s32.totalorder %s291, %s292
      %p304 = scmp.eq.s32.totalorder %s30, 1
      %p305 = por %p303, %p304
      %p307 = scmp.ne.s32.totalorder %s292, %s306
      %p308 = scmp.eq.s32.totalorder %s30, 0
      %p309 = por %p307, %p308
      %s311 = sadd.s32 %s310, 1
      %p314 = scmp.eq.s32.totalorder %s24, 1
      %p315 = scmp.ne.s32.totalorder %s310, %s312
      %p316 = scmp.eq.s32.totalorder %s24, 0
      %p317 = por %p315, %p316
      %p318 = scmp.ne.s32.totalorder %s310, %s312
      %p319 = scmp.eq.s32.totalorder %s29, 1
      %p320 = por %p318, %p319
      %p321 = scmp.ne.s32.totalorder %s312, %s313
      %p322 = scmp.eq.s32.totalorder %s29, 0
      %p323 = por %p321, %p322
      %p324 = scmp.ne.s32.totalorder %s312, %s313
      %p325 = scmp.eq.s32.totalorder %s30, 1
      %p326 = por %p324, %p325
      %p328 = scmp.ne.s32.totalorder %s313, %s327
      %p329 = scmp.eq.s32.totalorder %s30, 0
      %p330 = por %p328, %p329
      %s332 = sadd.s32 %s331, 1
      %p335 = scmp.eq.s32.totalorder %s24, 1
      %p336 = scmp.ne.s32.totalorder %s331, %s333
      %p337 = scmp.eq.s32.totalorder %s24, 0
      %p338 = por %p336, %p337
      %p339 = scmp.ne.s32.totalorder %s331, %s333
      %p340 = scmp.eq.s32.totalorder %s29, 1
      %p341 = por %p339, %p340
      %p342 = scmp.ne.s32.totalorder %s333, %s334
      %p343 = scmp.eq.s32.totalorder %s29, 0
      %p344 = por %p342, %p343
      %p345 = scmp.ne.s32.totalorder %s333, %s334
      %p346 = scmp.eq.s32.totalorder %s30, 1
      %p347 = por %p345, %p346
      %p349 = scmp.ne.s32.totalorder %s334, %s348
      %p350 = scmp.eq.s32.totalorder %s30, 0
      %p351 = por %p349, %p350
      %s352 = ssub.s32 %s24, %s31
      %p353 = scmp.eq.s32.totalorder %s352, 0
      %s355 = sadd.s32 %s354, 1
      %s356 = scalar_select %p353, %s354, %s355
      %p359 = pneg %p353
      %p360 = scmp.eq.s32.totalorder %s24, 1
      %p361 = por %p359, %p360
      %p362 = scmp.ne.s32.totalorder %s354, %s357
      %p363 = scmp.eq.s32.totalorder %s24, 0
      %p364 = por %p362, %p363
      %p365 = scmp.ne.s32.totalorder %s354, %s357
      %p366 = scmp.eq.s32.totalorder %s29, 1
      %p367 = por %p365, %p366
      %p368 = scmp.ne.s32.totalorder %s357, %s358
      %p369 = scmp.eq.s32.totalorder %s29, 0
      %p370 = por %p368, %p369
      %p371 = scmp.ne.s32.totalorder %s357, %s358
      %p372 = scmp.eq.s32.totalorder %s30, 1
      %p373 = por %p371, %p372
      %p375 = scmp.ne.s32.totalorder %s358, %s374
      %p376 = scmp.eq.s32.totalorder %s30, 0
      %p377 = por %p375, %p376
      %p378 = scmp.le.s32.totalorder 1, %s24
      %p379 = scmp.lt.s32.totalorder %s24, 3
      %p380 = pnand %p378, %p379
      %p381 = pneg %p380
      // Predicated region
      $region9: #{autoencoder_forward.1} parent=5 // pred_check
        _
      $region10: #{autoencoder_forward.1} parent=5 // pred_check_branch
        %383 = sbr.rel (%p380) target = $region12
      $region11: #{autoencoder_forward.1} parent=5 // pred_region
        %s384 = ssub.s32 %s24, 1
        // Predicated region
        $region13: #{autoencoder_forward.1} parent=11 // pred_check
          %p385 = pneg %p71
        $region14: #{autoencoder_forward.1} parent=11 // pred_check_branch
          %387 = sbr.rel (%p385) target = $region16
        $region15: #{autoencoder_forward.1} parent=11 // pred_region
          _
        $region16: #{autoencoder_forward.1} parent=11 // pred_fallthru
          _
        // Predicated region
        $region17: #{autoencoder_forward.1} parent=11 // pred_check
          %p388 = pneg %p92
        $region18: #{autoencoder_forward.1} parent=11 // pred_check_branch
          %390 = sbr.rel (%p388) target = $region20
        $region19: #{autoencoder_forward.1} parent=11 // pred_region
          _
        $region20: #{autoencoder_forward.1} parent=11 // pred_fallthru
          _
        // Predicated region
        $region21: #{autoencoder_forward.1} parent=11 // pred_check
          %p391 = pneg %p113
        $region22: #{autoencoder_forward.1} parent=11 // pred_check_branch
          %393 = sbr.rel (%p391) target = $region24
        $region23: #{autoencoder_forward.1} parent=11 // pred_region
          _
        $region24: #{autoencoder_forward.1} parent=11 // pred_fallthru
          _
        // Predicated region
        $region25: #{autoencoder_forward.1} parent=11 // pred_check
          %p394 = pneg %p134
        $region26: #{autoencoder_forward.1} parent=11 // pred_check_branch
          %396 = sbr.rel (%p394) target = $region28
        $region27: #{autoencoder_forward.1} parent=11 // pred_region
          _
        $region28: #{autoencoder_forward.1} parent=11 // pred_fallthru
          _
        // Predicated region
        $region29: #{autoencoder_forward.1} parent=11 // pred_check
          %p397 = pneg %p155
        $region30: #{autoencoder_forward.1} parent=11 // pred_check_branch
          %399 = sbr.rel (%p397) target = $region32
        $region31: #{autoencoder_forward.1} parent=11 // pred_region
          _
        $region32: #{autoencoder_forward.1} parent=11 // pred_fallthru
          _
        // Predicated region
        $region33: #{autoencoder_forward.1} parent=11 // pred_check
          %p400 = pneg %p176
        $region34: #{autoencoder_forward.1} parent=11 // pred_check_branch
          %402 = sbr.rel (%p400) target = $region36
        $region35: #{autoencoder_forward.1} parent=11 // pred_region
          _
        $region36: #{autoencoder_forward.1} parent=11 // pred_fallthru
          _
        // Predicated region
        $region37: #{autoencoder_forward.1} parent=11 // pred_check
          %p403 = pneg %p197
        $region38: #{autoencoder_forward.1} parent=11 // pred_check_branch
          %405 = sbr.rel (%p403) target = $region40
        $region39: #{autoencoder_forward.1} parent=11 // pred_region
          _
        $region40: #{autoencoder_forward.1} parent=11 // pred_fallthru
          _
        // Predicated region
        $region41: #{autoencoder_forward.1} parent=11 // pred_check
          %p406 = pneg %p218
        $region42: #{autoencoder_forward.1} parent=11 // pred_check_branch
          %408 = sbr.rel (%p406) target = $region44
        $region43: #{autoencoder_forward.1} parent=11 // pred_region
          _
        $region44: #{autoencoder_forward.1} parent=11 // pred_fallthru
          _
        // Predicated region
        $region45: #{autoencoder_forward.1} parent=11 // pred_check
          %p409 = pneg %p239
        $region46: #{autoencoder_forward.1} parent=11 // pred_check_branch
          %411 = sbr.rel (%p409) target = $region48
        $region47: #{autoencoder_forward.1} parent=11 // pred_region
          _
        $region48: #{autoencoder_forward.1} parent=11 // pred_fallthru
          _
        // Predicated region
        $region49: #{autoencoder_forward.1} parent=11 // pred_check
          %p412 = pneg %p260
        $region50: #{autoencoder_forward.1} parent=11 // pred_check_branch
          %414 = sbr.rel (%p412) target = $region52
        $region51: #{autoencoder_forward.1} parent=11 // pred_region
          _
        $region52: #{autoencoder_forward.1} parent=11 // pred_fallthru
          _
        // Predicated region
        $region53: #{autoencoder_forward.1} parent=11 // pred_check
          %p415 = pneg %p281
        $region54: #{autoencoder_forward.1} parent=11 // pred_check_branch
          %417 = sbr.rel (%p415) target = $region56
        $region55: #{autoencoder_forward.1} parent=11 // pred_region
          _
        $region56: #{autoencoder_forward.1} parent=11 // pred_fallthru
          _
        // Predicated region
        $region57: #{autoencoder_forward.1} parent=11 // pred_check
          %p418 = pneg %p302
        $region58: #{autoencoder_forward.1} parent=11 // pred_check_branch
          %420 = sbr.rel (%p418) target = $region60
        $region59: #{autoencoder_forward.1} parent=11 // pred_region
          _
        $region60: #{autoencoder_forward.1} parent=11 // pred_fallthru
          _
        // Predicated region
        $region61: #{autoencoder_forward.1} parent=11 // pred_check
          %p421 = pneg %p323
        $region62: #{autoencoder_forward.1} parent=11 // pred_check_branch
          %423 = sbr.rel (%p421) target = $region64
        $region63: #{autoencoder_forward.1} parent=11 // pred_region
          _
        $region64: #{autoencoder_forward.1} parent=11 // pred_fallthru
          _
        // Predicated region
        $region65: #{autoencoder_forward.1} parent=11 // pred_check
          %p424 = pneg %p344
        $region66: #{autoencoder_forward.1} parent=11 // pred_check_branch
          %426 = sbr.rel (%p424) target = $region68
        $region67: #{autoencoder_forward.1} parent=11 // pred_region
          _
        $region68: #{autoencoder_forward.1} parent=11 // pred_fallthru
          _
      $region12: #{autoencoder_forward.1} parent=5 // pred_fallthru
        _
      %p427 = scmp.lt.s32.totalorder %s24, 2
      // Predicated region
      $region69: #{autoencoder_forward.1} parent=5 // pred_check
        %p428 = pneg %p427
      $region70: #{autoencoder_forward.1} parent=5 // pred_check_branch
        %430 = sbr.rel (%p428) target = $region72
      $region71: #{autoencoder_forward.1} parent=5 // pred_region
        // Predicated region
        $region73: #{autoencoder_forward.1} parent=71 // pred_check
          %p431 = pneg %p44
        $region74: #{autoencoder_forward.1} parent=71 // pred_check_branch
          %433 = sbr.rel (%p431) target = $region76
        $region75: #{autoencoder_forward.1} parent=71 // pred_region
          %s434 = smul.u32 2, %s24
          %p435 = scmp.lt.s32.totalorder %s434, 3
          %s436 = scalar_select %p435, %s434, 3
          %s437 = smul.addr %s436, 7
          %s438 = smul.addr %s437, 8
          %s439 = scalar_lea.vmem %s0, %s438
          %s440 = smul.u32 2, %s24
        $region76: #{autoencoder_forward.1} parent=71 // pred_fallthru
          _
      $region72: #{autoencoder_forward.1} parent=5 // pred_fallthru
        _
      %p441 = scmp.le.s32.totalorder 1, %s24
      %p442 = scmp.lt.s32.totalorder %s24, 3
      %p443 = pnand %p441, %p442
      %p444 = pneg %p443
      // Predicated region
      $region77: #{autoencoder_forward.1} parent=5 // pred_check
        _
      $region78: #{autoencoder_forward.1} parent=5 // pred_check_branch
        %446 = sbr.rel (%p443) target = $region80
      $region79: #{autoencoder_forward.1} parent=5 // pred_region
        %s447 = ssub.s32 %s24, 1
        %s448 = smul.u32 2, %s29
        %p449 = scmp.lt.s32.totalorder %s448, 3
        %s450 = scalar_select %p449, %s448, 3
        %s451 = smul.addr %s450, 7
        %s452 = smul.addr %s451, 8
        %s453 = scalar_lea.vmem %s0, %s452
        %p454 = pneg %p50
        %p455 = pneg %p47
        %p456 = pneg %p71
        %p457 = pneg %p68
        %p458 = pneg %p92
        %p459 = pneg %p89
        %p460 = pneg %p113
        %p461 = pneg %p110
        %p462 = pneg %p134
        %p463 = pneg %p131
        %p464 = pneg %p155
        %p465 = pneg %p152
        %p466 = pneg %p176
        %p467 = pneg %p173
        %p468 = pneg %p197
        %p469 = pneg %p194
        %p470 = pneg %p218
        %p471 = pneg %p215
        %p472 = pneg %p239
        %p473 = pneg %p236
        %p474 = pneg %p260
        %p475 = pneg %p257
        %p476 = pneg %p281
        %p477 = pneg %p278
        %p478 = pneg %p302
        %p479 = pneg %p299
        %p480 = pneg %p323
        %p481 = pneg %p320
        %p482 = pneg %p344
        %p483 = pneg %p341
        %p484 = pneg %p370
        %p485 = pneg %p367
        %s486 = sand.u32 %s357, 1
        %s487 = scalar_lea.sflag [#allocation3], %s486
        %s488 = sand.u32 %s357, 1
        %s489 = smul.addr %s488, 56
        %s490 = scalar_lea.vmem [#allocation2], %s489
        %s491 = smul.u32 2, %s29
        %p492 = scmp.lt.s32.totalorder %s491, 3
        %s493 = scalar_select %p492, %s491, 3
        %s494 = smul.addr %s493, 7
        %s495 = smul.addr %s494, 8
        %s496 = scalar_lea.vmem %s0, %s495
        %s497 = smul.u32 2, %s29
        %s498 = smul.u32 2, %s29
        %v500 = vld [vmem:[%s496] sm:$0xff]
        %v501 = vld [vmem:[%s496 + $0x8] sm:$0xff]
        %v502 = vld [vmem:[%s496 + $0x10] sm:$0xff]
        %v503 = vld [vmem:[%s496 + $0x18] sm:$0xff]
        %v504 = vld [vmem:[%s496 + $0x20] sm:$0xff]
        %v505 = vld [vmem:[%s496 + $0x28] sm:$0xff]
        %v506 = vld [vmem:[%s496 + $0x30] sm:$0xff]
        %v507 = vld [vmem:[%s496 + $0x38] sm:$0xff]
        %v508 = vld [vmem:[%s496 + $0x40] sm:$0xff]
        %v509 = vld [vmem:[%s496 + $0x48] sm:$0xff]
        %v510 = vld [vmem:[%s496 + $0x50] sm:$0xff]
        %v511 = vld [vmem:[%s496 + $0x58] sm:$0xff]
        %v512 = vld [vmem:[%s496 + $0x60] sm:$0xff]
        %v513 = vld [vmem:[%s496 + $0x68] sm:$0xff]
        %v514 = vpack.c.bf16 %v507, %v500
        %v515 = vpack.c.bf16 %v508, %v501
        %v516 = vpack.c.bf16 %v509, %v502
        %v517 = vpack.c.bf16 %v510, %v503
        %v518 = vpack.c.bf16 %v511, %v504
        %v519 = vpack.c.bf16 %v512, %v505
        %v520 = vpack.c.bf16 %v513, %v506
        %v521 = vld [vmem:[%s1] sm:$0xf]
        %v522 = vld [vmem:[%s1 + $0x4] sm:$0xf]
        %v523 = vld [vmem:[%s1 + $0x8] sm:$0xf]
        %v524 = vld [vmem:[%s1 + $0xc] sm:$0xf]
        %v525 = vld [vmem:[%s1 + $0x10] sm:$0xf]
        %v526 = vld [vmem:[%s1 + $0x14] sm:$0xf]
        %v527 = vld [vmem:[%s1 + $0x18] sm:$0xf]
        %v528 = vld [vmem:[%s1 + $0x1c] sm:$0xf]
        %v529 = vld [vmem:[%s1 + $0x20] sm:$0xf]
        %v530 = vld [vmem:[%s1 + $0x24] sm:$0xf]
        %v531 = vld [vmem:[%s1 + $0x28] sm:$0xf]
        %v532 = vld [vmem:[%s1 + $0x2c] sm:$0xf]
        %v533 = vld [vmem:[%s1 + $0x30] sm:$0xf]
        %v534 = vld [vmem:[%s1 + $0x34] sm:$0xf]
        %v535 = vld [vmem:[%s1 + $0x38] sm:$0xf]
        %v536 = vld [vmem:[%s1 + $0x3c] sm:$0xf]
        %v537 = vld [vmem:[%s1 + $0x40] sm:$0xf]
        %v538 = vld [vmem:[%s1 + $0x44] sm:$0xf]
        %v539 = vld [vmem:[%s1 + $0x48] sm:$0xf]
        %v540 = vld [vmem:[%s1 + $0x4c] sm:$0xf]
        %v541 = vld [vmem:[%s1 + $0x50] sm:$0xf]
        %v542 = vld [vmem:[%s1 + $0x54] sm:$0xf]
        %v543 = vld [vmem:[%s1 + $0x58] sm:$0xf]
        %v544 = vld [vmem:[%s1 + $0x5c] sm:$0xf]
        %v545 = vld [vmem:[%s1 + $0x60] sm:$0xf]
        %v546 = vld [vmem:[%s1 + $0x64] sm:$0xf]
        %v547 = vld [vmem:[%s1 + $0x68] sm:$0xf]
        %v548 = vld [vmem:[%s1 + $0x6c] sm:$0xf]
        %v549 = vld [vmem:[%s1 + $0x70] sm:$0xf]
        %v550 = vld [vmem:[%s1 + $0x74] sm:$0xf]
        %v551 = vld [vmem:[%s1 + $0x78] sm:$0xf]
        %v552 = vld [vmem:[%s1 + $0x7c] sm:$0xf]
        %v553 = vld [vmem:[%s1 + $0x80] sm:$0xf]
        %v554 = vld [vmem:[%s1 + $0x84] sm:$0xf]
        %v555 = vld [vmem:[%s1 + $0x88] sm:$0xf]
        %v556 = vld [vmem:[%s1 + $0x8c] sm:$0xf]
        %v557 = vld [vmem:[%s1 + $0x90] sm:$0xf]
        %v558 = vld [vmem:[%s1 + $0x94] sm:$0xf]
        %v559 = vld [vmem:[%s1 + $0x98] sm:$0xf]
        %v560 = vld [vmem:[%s1 + $0x9c] sm:$0xf]
        %v561 = vld [vmem:[%s1 + $0xa0] sm:$0xf]
        %v562 = vld [vmem:[%s1 + $0xa4] sm:$0xf]
        %v563 = vld [vmem:[%s1 + $0xa8] sm:$0xf]
        %v564 = vld [vmem:[%s1 + $0xac] sm:$0xf]
        %v565 = vld [vmem:[%s1 + $0xb0] sm:$0xf]
        %v566 = vld [vmem:[%s1 + $0xb4] sm:$0xf]
        %v567 = vld [vmem:[%s1 + $0xb8] sm:$0xf]
        %v568 = vld [vmem:[%s1 + $0xbc] sm:$0xf]
        %v569 = vld [vmem:[%s1 + $0xc0] sm:$0xf]
        %v570 = vld [vmem:[%s1 + $0xc4] sm:$0xf]
        %v571 = vld [vmem:[%s1 + $0xc8] sm:$0xf]
        %v572 = vld [vmem:[%s1 + $0xcc] sm:$0xf]
        %v573 = vld [vmem:[%s1 + $0xd0] sm:$0xf]
        %v574 = vld [vmem:[%s1 + $0xd4] sm:$0xf]
        %v575 = vld [vmem:[%s1 + $0xd8] sm:$0xf]
        %v576 = vld [vmem:[%s1 + $0xdc] sm:$0xf]
        %v577 = vld [vmem:[%s1 + $0xe0] sm:$0xf]
        %v578 = vld [vmem:[%s1 + $0xe4] sm:$0xf]
        %v579 = vld [vmem:[%s1 + $0xe8] sm:$0xf]
        %v580 = vld [vmem:[%s1 + $0xec] sm:$0xf]
        %v581 = vld [vmem:[%s1 + $0xf0] sm:$0xf]
        %v582 = vld [vmem:[%s1 + $0xf4] sm:$0xf]
        %v583 = vld [vmem:[%s1 + $0xf8] sm:$0xf]
        %v584 = vld [vmem:[%s1 + $0xfc] sm:$0xf]
        %v585 = vld [vmem:[%s1 + $0x100] sm:$0xf]
        %v586 = vld [vmem:[%s1 + $0x104] sm:$0xf]
        %v587 = vld [vmem:[%s1 + $0x108] sm:$0xf]
        %v588 = vld [vmem:[%s1 + $0x10c] sm:$0xf]
        %v589 = vld [vmem:[%s1 + $0x110] sm:$0xf]
        %v590 = vld [vmem:[%s1 + $0x114] sm:$0xf]
        %v591 = vld [vmem:[%s1 + $0x118] sm:$0xf]
        %v592 = vld [vmem:[%s1 + $0x11c] sm:$0xf]
        %v593 = vld [vmem:[%s1 + $0x120] sm:$0xf]
        %v594 = vld [vmem:[%s1 + $0x124] sm:$0xf]
        %v595 = vld [vmem:[%s1 + $0x128] sm:$0xf]
        %v596 = vld [vmem:[%s1 + $0x12c] sm:$0xf]
        %v597 = vld [vmem:[%s1 + $0x130] sm:$0xf]
        %v598 = vld [vmem:[%s1 + $0x134] sm:$0xf]
        %v599 = vld [vmem:[%s1 + $0x138] sm:$0xf]
        %v600 = vld [vmem:[%s1 + $0x13c] sm:$0xf]
        %v601 = vld [vmem:[%s1 + $0x140] sm:$0xf]
        %v602 = vld [vmem:[%s1 + $0x144] sm:$0xf]
        %v603 = vld [vmem:[%s1 + $0x148] sm:$0xf]
        %v604 = vld [vmem:[%s1 + $0x14c] sm:$0xf]
        %v605 = vld [vmem:[%s1 + $0x150] sm:$0xf]
        %v606 = vld [vmem:[%s1 + $0x154] sm:$0xf]
        %v607 = vld [vmem:[%s1 + $0x158] sm:$0xf]
        %v608 = vld [vmem:[%s1 + $0x15c] sm:$0xf]
        %v609 = vld [vmem:[%s1 + $0x160] sm:$0xf]
        %v610 = vld [vmem:[%s1 + $0x164] sm:$0xf]
        %v611 = vld [vmem:[%s1 + $0x168] sm:$0xf]
        %v612 = vld [vmem:[%s1 + $0x16c] sm:$0xf]
        %v613 = vld [vmem:[%s1 + $0x170] sm:$0xf]
        %v614 = vld [vmem:[%s1 + $0x174] sm:$0xf]
        %v615 = vld [vmem:[%s1 + $0x178] sm:$0xf]
        %v616 = vld [vmem:[%s1 + $0x17c] sm:$0xf]
        %v617 = vld [vmem:[%s1 + $0x180] sm:$0xf]
        %v618 = vld [vmem:[%s1 + $0x184] sm:$0xf]
        %v619 = vld [vmem:[%s2] sm:$0x1]
        %v621 = vlaneseq
        %v622 = vshrl.u32 %v621, 7
        %v623 = vsub.s32 0, %v622
        %v624 = vrot.slane %v619, %v623
        %v724 = vunpack.c.l.b16 %v521
        %v725 = vunpack.c.l.b16 %v522
        %v726 = vunpack.c.l.b16 %v523
        %v727 = vunpack.c.l.b16 %v524
        %v728 = vunpack.c.l.b16 %v525
        %v729 = vunpack.c.l.b16 %v526
        %v730 = vunpack.c.l.b16 %v527
        %v731 = vunpack.c.l.b16 %v528
        %v732 = vunpack.c.l.b16 %v529
        %v733 = vunpack.c.l.b16 %v530
        %v734 = vunpack.c.l.b16 %v531
        %v735 = vunpack.c.l.b16 %v532
        %v736 = vunpack.c.l.b16 %v533
        %v737 = vunpack.c.l.b16 %v534
        %v738 = vunpack.c.l.b16 %v535
        %v739 = vunpack.c.l.b16 %v536
        %v740 = vunpack.c.l.b16 %v537
        %v741 = vunpack.c.l.b16 %v538
        %v742 = vunpack.c.l.b16 %v539
        %v743 = vunpack.c.l.b16 %v540
        %v744 = vunpack.c.l.b16 %v541
        %v745 = vunpack.c.l.b16 %v542
        %v746 = vunpack.c.l.b16 %v543
        %v747 = vunpack.c.l.b16 %v544
        %v748 = vunpack.c.l.b16 %v545
        %v749 = vunpack.c.l.b16 %v546
        %v750 = vunpack.c.l.b16 %v547
        %v751 = vunpack.c.l.b16 %v548
        %v752 = vunpack.c.l.b16 %v549
        %v753 = vunpack.c.l.b16 %v550
        %v754 = vunpack.c.l.b16 %v551
        %v755 = vunpack.c.l.b16 %v552
        %v756 = vunpack.c.l.b16 %v553
        %v757 = vunpack.c.l.b16 %v554
        %v758 = vunpack.c.l.b16 %v555
        %v759 = vunpack.c.l.b16 %v556
        %v760 = vunpack.c.l.b16 %v557
        %v761 = vunpack.c.l.b16 %v558
        %v762 = vunpack.c.l.b16 %v559
        %v763 = vunpack.c.l.b16 %v560
        %v764 = vunpack.c.l.b16 %v561
        %v765 = vunpack.c.l.b16 %v562
        %v766 = vunpack.c.l.b16 %v563
        %v767 = vunpack.c.l.b16 %v564
        %v768 = vunpack.c.l.b16 %v565
        %v769 = vunpack.c.l.b16 %v566
        %v770 = vunpack.c.l.b16 %v567
        %v771 = vunpack.c.l.b16 %v568
        %v772 = vunpack.c.l.b16 %v569
        %v773 = vunpack.c.l.b16 %v570
        %v774 = vunpack.c.l.b16 %v571
        %v775 = vunpack.c.l.b16 %v572
        %v776 = vunpack.c.l.b16 %v573
        %v777 = vunpack.c.l.b16 %v574
        %v778 = vunpack.c.l.b16 %v575
        %v779 = vunpack.c.l.b16 %v576
        %v780 = vunpack.c.l.b16 %v577
        %v781 = vunpack.c.l.b16 %v578
        %v782 = vunpack.c.l.b16 %v579
        %v783 = vunpack.c.l.b16 %v580
        %v784 = vunpack.c.l.b16 %v581
        %v785 = vunpack.c.l.b16 %v582
        %v786 = vunpack.c.l.b16 %v583
        %v787 = vunpack.c.l.b16 %v584
        %v788 = vunpack.c.l.b16 %v585
        %v789 = vunpack.c.l.b16 %v586
        %v790 = vunpack.c.l.b16 %v587
        %v791 = vunpack.c.l.b16 %v588
        %v792 = vunpack.c.l.b16 %v589
        %v793 = vunpack.c.l.b16 %v590
        %v794 = vunpack.c.l.b16 %v591
        %v795 = vunpack.c.l.b16 %v592
        %v796 = vunpack.c.l.b16 %v593
        %v797 = vunpack.c.l.b16 %v594
        %v798 = vunpack.c.l.b16 %v595
        %v799 = vunpack.c.l.b16 %v596
        %v800 = vunpack.c.l.b16 %v597
        %v801 = vunpack.c.l.b16 %v598
        %v802 = vunpack.c.l.b16 %v599
        %v803 = vunpack.c.l.b16 %v600
        %v804 = vunpack.c.l.b16 %v601
        %v805 = vunpack.c.l.b16 %v602
        %v806 = vunpack.c.l.b16 %v603
        %v807 = vunpack.c.l.b16 %v604
        %v808 = vunpack.c.l.b16 %v605
        %v809 = vunpack.c.l.b16 %v606
        %v810 = vunpack.c.l.b16 %v607
        %v811 = vunpack.c.l.b16 %v608
        %v812 = vunpack.c.l.b16 %v609
        %v813 = vunpack.c.l.b16 %v610
        %v814 = vunpack.c.l.b16 %v611
        %v815 = vunpack.c.l.b16 %v612
        %v816 = vunpack.c.l.b16 %v613
        %v817 = vunpack.c.l.b16 %v614
        %v818 = vunpack.c.l.b16 %v615
        %v819 = vunpack.c.l.b16 %v616
        %v820 = vunpack.c.l.b16 %v617
        %v821 = vunpack.c.l.b16 %v618
        %v822 = vpack.c.b16 %v725, %v724
        %v823 = vpack.c.b16 %v727, %v726
        %v824 = vpack.c.b16 %v729, %v728
        %v825 = vpack.c.b16 %v731, %v730
        %v826 = vpack.c.b16 %v733, %v732
        %v827 = vpack.c.b16 %v735, %v734
        %v828 = vpack.c.b16 %v737, %v736
        %v829 = vpack.c.b16 %v739, %v738
        %v830 = vpack.c.b16 %v741, %v740
        %v831 = vpack.c.b16 %v743, %v742
        %v832 = vpack.c.b16 %v745, %v744
        %v833 = vpack.c.b16 %v747, %v746
        %v834 = vpack.c.b16 %v749, %v748
        %v835 = vpack.c.b16 %v751, %v750
        %v836 = vpack.c.b16 %v753, %v752
        %v837 = vpack.c.b16 %v755, %v754
        %v838 = vpack.c.b16 %v757, %v756
        %v839 = vpack.c.b16 %v759, %v758
        %v840 = vpack.c.b16 %v761, %v760
        %v841 = vpack.c.b16 %v763, %v762
        %v842 = vpack.c.b16 %v765, %v764
        %v843 = vpack.c.b16 %v767, %v766
        %v844 = vpack.c.b16 %v769, %v768
        %v845 = vpack.c.b16 %v771, %v770
        %v846 = vpack.c.b16 %v773, %v772
        %v847 = vpack.c.b16 %v775, %v774
        %v848 = vpack.c.b16 %v777, %v776
        %v849 = vpack.c.b16 %v779, %v778
        %v850 = vpack.c.b16 %v781, %v780
        %v851 = vpack.c.b16 %v783, %v782
        %v852 = vpack.c.b16 %v785, %v784
        %v853 = vpack.c.b16 %v787, %v786
        %v854 = vpack.c.b16 %v789, %v788
        %v855 = vpack.c.b16 %v791, %v790
        %v856 = vpack.c.b16 %v793, %v792
        %v857 = vpack.c.b16 %v795, %v794
        %v858 = vpack.c.b16 %v797, %v796
        %v859 = vpack.c.b16 %v799, %v798
        %v860 = vpack.c.b16 %v801, %v800
        %v861 = vpack.c.b16 %v803, %v802
        %v862 = vpack.c.b16 %v805, %v804
        %v863 = vpack.c.b16 %v807, %v806
        %v864 = vpack.c.b16 %v809, %v808
        %v865 = vpack.c.b16 %v811, %v810
        %v866 = vpack.c.b16 %v813, %v812
        %v867 = vpack.c.b16 %v815, %v814
        %v868 = vpack.c.b16 %v817, %v816
        %v869 = vpack.c.b16 %v819, %v818
        %v870 = vpack.c.b16 %v821, %v820
        %vm920 = vcmask 130048
        %v922 = vsel %vm920, %v520, 0
        %924 = vmatprep.subr.bf16.mxu0 0
        %925 = vmatpush1.bf16.msra.mxu0 %v829
        %926 = vmatprep.subr.bf16.mxu0 0
        %927 = vmatpush1.bf16.msra.mxu0 %v828
        %928 = vmatprep.subr.bf16.mxu0 0
        %929 = vmatpush1.bf16.msra.mxu0 %v827
        %930 = vmatprep.subr.bf16.mxu0 0
        %931 = vmatpush1.bf16.msra.mxu0 %v826
        %932 = vmatprep.subr.bf16.mxu0 0
        %933 = vmatpush1.bf16.msra.mxu0 %v825
        %934 = vmatprep.subr.bf16.mxu0 0
        %935 = vmatpush1.bf16.msra.mxu0 %v824
        %936 = vmatprep.subr.bf16.mxu0 0
        %937 = vmatpush1.bf16.msra.mxu0 %v823
        %938 = vmatprep.subr.bf16.mxu0 0
        %939 = vmatpush1.bf16.msra.mxu0 %v822
        %940 = vmatprep.subr.bf16.mxu0 0
        %941 = vmatpush2.bf16.msra.mxu0 %v837
        %942 = vmatprep.subr.bf16.mxu0 0
        %943 = vmatpush2.bf16.msra.mxu0 %v836
        %944 = vmatprep.subr.bf16.mxu0 0
        %945 = vmatpush2.bf16.msra.mxu0 %v835
        %946 = vmatprep.subr.bf16.mxu0 0
        %947 = vmatpush2.bf16.msra.mxu0 %v834
        %948 = vmatprep.subr.bf16.mxu0 0
        %949 = vmatpush2.bf16.msra.mxu0 %v833
        %950 = vmatprep.subr.bf16.mxu0 0
        %951 = vmatpush2.bf16.msra.mxu0 %v832
        %952 = vmatprep.subr.bf16.mxu0 0
        %953 = vmatpush2.bf16.msra.mxu0 %v831
        %954 = vmatprep.subr.bf16.mxu0 0
        %955 = vmatpush2.bf16.msra.mxu0 %v830
        %956 = vmatprep.mubr.bf16.mxu0 %v515
        %957 = vmatmul.mubr.bf16.gmra.mxu0 %v514
        %v958 = vpop.f32.mrf.mxu0
        %v959 = vadd.f32 %v624, %v958
        %v960 = vpop.f32.mrf.mxu0
        %v961 = vpop.f32.mrf.mxu0
        %v962 = vadd.f32 %v624, %v961
        %v963 = vpop.f32.mrf.mxu0
        %964 = vdwg.mxu0
        %965 = vmatprep.subr.bf16.mxu0 0
        %966 = vmatpush1.bf16.msra.mxu0 %v845
        %967 = vmatprep.subr.bf16.mxu0 0
        %968 = vmatpush1.bf16.msra.mxu0 %v844
        %969 = vmatprep.subr.bf16.mxu0 0
        %970 = vmatpush1.bf16.msra.mxu0 %v843
        %971 = vmatprep.subr.bf16.mxu0 0
        %972 = vmatpush1.bf16.msra.mxu0 %v842
        %973 = vmatprep.subr.bf16.mxu0 0
        %974 = vmatpush1.bf16.msra.mxu0 %v841
        %975 = vmatprep.subr.bf16.mxu0 0
        %976 = vmatpush1.bf16.msra.mxu0 %v840
        %977 = vmatprep.subr.bf16.mxu0 0
        %978 = vmatpush1.bf16.msra.mxu0 %v839
        %979 = vmatprep.subr.bf16.mxu0 0
        %980 = vmatpush1.bf16.msra.mxu0 %v838
        %981 = vmatprep.subr.bf16.mxu0 0
        %982 = vmatpush2.bf16.msra.mxu0 %v853
        %983 = vmatprep.subr.bf16.mxu0 0
        %984 = vmatpush2.bf16.msra.mxu0 %v852
        %985 = vmatprep.subr.bf16.mxu0 0
        %986 = vmatpush2.bf16.msra.mxu0 %v851
        %987 = vmatprep.subr.bf16.mxu0 0
        %988 = vmatpush2.bf16.msra.mxu0 %v850
        %989 = vmatprep.subr.bf16.mxu0 0
        %990 = vmatpush2.bf16.msra.mxu0 %v849
        %991 = vmatprep.subr.bf16.mxu0 0
        %992 = vmatpush2.bf16.msra.mxu0 %v848
        %993 = vmatprep.subr.bf16.mxu0 0
        %994 = vmatpush2.bf16.msra.mxu0 %v847
        %995 = vmatprep.subr.bf16.mxu0 0
        %996 = vmatpush2.bf16.msra.mxu0 %v846
        %997 = vmatprep.mubr.bf16.mxu0 %v517
        %998 = vmatmul.mubr.bf16.gmra.mxu0 %v516
        %v999 = vpop.f32.mrf.mxu0
        %v1000 = vadd.f32 %v959, %v999
        %v1001 = vpop.f32.mrf.mxu0
        %v1002 = vpop.f32.mrf.mxu0
        %v1003 = vadd.f32 %v962, %v1002
        %v1004 = vpop.f32.mrf.mxu0
        %1005 = vdwg.mxu0
        %1006 = vmatprep.subr.bf16.mxu0 0
        %1007 = vmatpush1.bf16.msra.mxu0 %v861
        %1008 = vmatprep.subr.bf16.mxu0 0
        %1009 = vmatpush1.bf16.msra.mxu0 %v860
        %1010 = vmatprep.subr.bf16.mxu0 0
        %1011 = vmatpush1.bf16.msra.mxu0 %v859
        %1012 = vmatprep.subr.bf16.mxu0 0
        %1013 = vmatpush1.bf16.msra.mxu0 %v858
        %1014 = vmatprep.subr.bf16.mxu0 0
        %1015 = vmatpush1.bf16.msra.mxu0 %v857
        %1016 = vmatprep.subr.bf16.mxu0 0
        %1017 = vmatpush1.bf16.msra.mxu0 %v856
        %1018 = vmatprep.subr.bf16.mxu0 0
        %1019 = vmatpush1.bf16.msra.mxu0 %v855
        %1020 = vmatprep.subr.bf16.mxu0 0
        %1021 = vmatpush1.bf16.msra.mxu0 %v854
        %1022 = vmatprep.subr.bf16.mxu0 0
        %1023 = vmatpush2.bf16.msra.mxu0 %v869
        %1024 = vmatprep.subr.bf16.mxu0 0
        %1025 = vmatpush2.bf16.msra.mxu0 %v868
        %1026 = vmatprep.subr.bf16.mxu0 0
        %1027 = vmatpush2.bf16.msra.mxu0 %v867
        %1028 = vmatprep.subr.bf16.mxu0 0
        %1029 = vmatpush2.bf16.msra.mxu0 %v866
        %1030 = vmatprep.subr.bf16.mxu0 0
        %1031 = vmatpush2.bf16.msra.mxu0 %v865
        %1032 = vmatprep.subr.bf16.mxu0 0
        %1033 = vmatpush2.bf16.msra.mxu0 %v864
        %1034 = vmatprep.subr.bf16.mxu0 0
        %1035 = vmatpush2.bf16.msra.mxu0 %v863
        %1036 = vmatprep.subr.bf16.mxu0 0
        %1037 = vmatpush2.bf16.msra.mxu0 %v862
        %1038 = vmatprep.mubr.bf16.mxu0 %v519
        %1039 = vmatmul.mubr.bf16.gmra.mxu0 %v518
        %v1040 = vpop.f32.mrf.mxu0
        %v1041 = vadd.f32 %v1000, %v1040
        %v1042 = vpop.f32.mrf.mxu0
        %v1043 = vpop.f32.mrf.mxu0
        %v1044 = vadd.f32 %v1003, %v1043
        %v1045 = vpop.f32.mrf.mxu0
        %1046 = vdwg.mxu0
        %1047 = vmatprep.subr.bf16.mxu0 0
        %1048 = vmatpush1.bf16.msra.mxu0 0
        %1049 = vmatprep.subr.bf16.mxu0 0
        %1050 = vmatpush1.bf16.msra.mxu0 0
        %1051 = vmatprep.subr.bf16.mxu0 0
        %1052 = vmatpush1.bf16.msra.mxu0 0
        %1053 = vmatprep.subr.bf16.mxu0 0
        %1054 = vmatpush1.bf16.msra.mxu0 0
        %1055 = vmatprep.subr.bf16.mxu0 0
        %1056 = vmatpush1.bf16.msra.mxu0 0
        %1057 = vmatprep.subr.bf16.mxu0 0
        %1058 = vmatpush1.bf16.msra.mxu0 0
        %1059 = vmatprep.subr.bf16.mxu0 0
        %1060 = vmatpush1.bf16.msra.mxu0 0
        %1061 = vmatprep.subr.bf16.mxu0 0
        %1062 = vmatpush1.bf16.msra.mxu0 %v870
        %1063 = vmatprep.subr.bf16.mxu0 0
        %1064 = vmatpush2.bf16.msra.mxu0 0
        %1065 = vmatprep.subr.bf16.mxu0 0
        %1066 = vmatpush2.bf16.msra.mxu0 0
        %1067 = vmatprep.subr.bf16.mxu0 0
        %1068 = vmatpush2.bf16.msra.mxu0 0
        %1069 = vmatprep.subr.bf16.mxu0 0
        %1070 = vmatpush2.bf16.msra.mxu0 0
        %1071 = vmatprep.subr.bf16.mxu0 0
        %1072 = vmatpush2.bf16.msra.mxu0 0
        %1073 = vmatprep.subr.bf16.mxu0 0
        %1074 = vmatpush2.bf16.msra.mxu0 0
        %1075 = vmatprep.subr.bf16.mxu0 0
        %1076 = vmatpush2.bf16.msra.mxu0 0
        %1077 = vmatprep.subr.bf16.mxu0 0
        %1078 = vmatpush2.bf16.msra.mxu0 0
        %1079 = vmatprep.mubr.bf16.mxu0 0
        %1080 = vmatmul.mubr.bf16.gmra.mxu0 %v922
        %v1081 = vpop.f32.mrf.mxu0
        %v1082 = vadd.f32 %v1041, %v1081
        %v1083 = vpop.f32.mrf.mxu0
        %v1084 = vpop.f32.mrf.mxu0
        %v1085 = vadd.f32 %v1044, %v1084
        %v1086 = vpop.f32.mrf.mxu0
        %1087 = vdwg.mxu0
        %v1088 = vmax.f32 %v1082, 0.0
        %v1089 = vmax.f32 %v1085, 0.0
        %v1090 = vpack.c.bf16 %v1089, %v1088
        %v1091 = vld [vmem:[%s3] sm:$0xf]
        %v1092 = vld [vmem:[%s3 + $0x4] sm:$0xf]
        %v1093 = vld [vmem:[%s3 + $0x8] sm:$0xf]
        %v1094 = vld [vmem:[%s3 + $0xc] sm:$0xf]
        %v1095 = vld [vmem:[%s3 + $0x10] sm:$0xf]
        %v1096 = vld [vmem:[%s3 + $0x14] sm:$0xf]
        %v1097 = vld [vmem:[%s3 + $0x18] sm:$0xf]
        %v1098 = vld [vmem:[%s3 + $0x1c] sm:$0xf]
        %v1099 = vld [vmem:[%s3 + $0x20] sm:$0xf]
        %v1100 = vld [vmem:[%s3 + $0x24] sm:$0xf]
        %v1101 = vld [vmem:[%s3 + $0x28] sm:$0xf]
        %v1102 = vld [vmem:[%s3 + $0x2c] sm:$0xf]
        %v1103 = vld [vmem:[%s3 + $0x30] sm:$0xf]
        %v1104 = vld [vmem:[%s3 + $0x34] sm:$0xf]
        %v1105 = vld [vmem:[%s3 + $0x38] sm:$0xf]
        %v1106 = vld [vmem:[%s3 + $0x3c] sm:$0xf]
        %v1107 = vld [vmem:[%s4] sm:$0x1]
        %v1109 = vlaneseq
        %v1110 = vshrl.u32 %v1109, 7
        %v1111 = vsub.s32 0, %v1110
        %v1112 = vrot.slane %v1107, %v1111
        %v1130 = vunpack.c.l.b16 %v1091
        %v1131 = vunpack.c.l.b16 %v1092
        %v1132 = vunpack.c.l.b16 %v1093
        %v1133 = vunpack.c.l.b16 %v1094
        %v1134 = vunpack.c.l.b16 %v1095
        %v1135 = vunpack.c.l.b16 %v1096
        %v1136 = vunpack.c.l.b16 %v1097
        %v1137 = vunpack.c.l.b16 %v1098
        %v1138 = vunpack.c.l.b16 %v1099
        %v1139 = vunpack.c.l.b16 %v1100
        %v1140 = vunpack.c.l.b16 %v1101
        %v1141 = vunpack.c.l.b16 %v1102
        %v1142 = vunpack.c.l.b16 %v1103
        %v1143 = vunpack.c.l.b16 %v1104
        %v1144 = vunpack.c.l.b16 %v1105
        %v1145 = vunpack.c.l.b16 %v1106
        %v1146 = vpack.c.b16 %v1131, %v1130
        %v1147 = vpack.c.b16 %v1133, %v1132
        %v1148 = vpack.c.b16 %v1135, %v1134
        %v1149 = vpack.c.b16 %v1137, %v1136
        %v1150 = vpack.c.b16 %v1139, %v1138
        %v1151 = vpack.c.b16 %v1141, %v1140
        %v1152 = vpack.c.b16 %v1143, %v1142
        %v1153 = vpack.c.b16 %v1145, %v1144
        %1162 = vmatprep.subr.bf16.mxu0 0
        %1163 = vmatpush1.bf16.msra.mxu0 %v1153
        %1164 = vmatprep.subr.bf16.mxu0 0
        %1165 = vmatpush1.bf16.msra.mxu0 %v1152
        %1166 = vmatprep.subr.bf16.mxu0 0
        %1167 = vmatpush1.bf16.msra.mxu0 %v1151
        %1168 = vmatprep.subr.bf16.mxu0 0
        %1169 = vmatpush1.bf16.msra.mxu0 %v1150
        %1170 = vmatprep.subr.bf16.mxu0 0
        %1171 = vmatpush1.bf16.msra.mxu0 %v1149
        %1172 = vmatprep.subr.bf16.mxu0 0
        %1173 = vmatpush1.bf16.msra.mxu0 %v1148
        %1174 = vmatprep.subr.bf16.mxu0 0
        %1175 = vmatpush1.bf16.msra.mxu0 %v1147
        %1176 = vmatprep.subr.bf16.mxu0 0
        %1177 = vmatpush1.bf16.msra.mxu0 %v1146
        %1178 = vmatprep.subr.bf16.mxu0 0
        %1179 = vmatpush2.bf16.msra.mxu0 0
        %1180 = vmatprep.subr.bf16.mxu0 0
        %1181 = vmatpush2.bf16.msra.mxu0 0
        %1182 = vmatprep.subr.bf16.mxu0 0
        %1183 = vmatpush2.bf16.msra.mxu0 0
        %1184 = vmatprep.subr.bf16.mxu0 0
        %1185 = vmatpush2.bf16.msra.mxu0 0
        %1186 = vmatprep.subr.bf16.mxu0 0
        %1187 = vmatpush2.bf16.msra.mxu0 0
        %1188 = vmatprep.subr.bf16.mxu0 0
        %1189 = vmatpush2.bf16.msra.mxu0 0
        %1190 = vmatprep.subr.bf16.mxu0 0
        %1191 = vmatpush2.bf16.msra.mxu0 0
        %1192 = vmatprep.subr.bf16.mxu0 0
        %1193 = vmatpush2.bf16.msra.mxu0 0
        %1194 = vmatprep.mubr.bf16.mxu0 0
        %1195 = vmatmul.mubr.bf16.gmra.mxu0 %v1090
        %v1196 = vpop.f32.mrf.mxu0
        %v1197 = vadd.f32 %v1112, %v1196
        %v1198 = vpop.f32.mrf.mxu0
        %v1199 = vpop.f32.mrf.mxu0
        %v1200 = vadd.f32 %v1112, %v1199
        %v1201 = vpop.f32.mrf.mxu0
        %1202 = vdwg.mxu0
        %v1203 = vmax.f32 %v1197, 0.0
        %v1204 = vmax.f32 %v1200, 0.0
        %v1205 = vpack.c.bf16 %v1204, %v1203
        %v1206 = vld [vmem:[%s5] sm:$0xf]
        %v1207 = vld [vmem:[%s5 + $0x4] sm:$0xf]
        %v1208 = vld [vmem:[%s5 + $0x8] sm:$0xf]
        %v1209 = vld [vmem:[%s5 + $0xc] sm:$0xf]
        %v1210 = vld [vmem:[%s5 + $0x10] sm:$0xf]
        %v1211 = vld [vmem:[%s5 + $0x14] sm:$0xf]
        %v1212 = vld [vmem:[%s5 + $0x18] sm:$0xf]
        %v1213 = vld [vmem:[%s5 + $0x1c] sm:$0xf]
        %v1214 = vld [vmem:[%s6] sm:$0x1]
        %v1216 = vlaneseq
        %v1217 = vshrl.u32 %v1216, 7
        %v1218 = vsub.s32 0, %v1217
        %v1219 = vrot.slane %v1214, %v1218
        %v1229 = vunpack.c.l.b16 %v1206
        %v1230 = vunpack.c.l.b16 %v1207
        %v1231 = vunpack.c.l.b16 %v1208
        %v1232 = vunpack.c.l.b16 %v1209
        %v1233 = vunpack.c.l.b16 %v1210
        %v1234 = vunpack.c.l.b16 %v1211
        %v1235 = vunpack.c.l.b16 %v1212
        %v1236 = vunpack.c.l.b16 %v1213
        %v1237 = vpack.c.b16 %v1230, %v1229
        %v1238 = vpack.c.b16 %v1232, %v1231
        %v1239 = vpack.c.b16 %v1234, %v1233
        %v1240 = vpack.c.b16 %v1236, %v1235
        %vm1245 = vcmask 523264
        %v1247 = vsel %vm1245, %v1205, 0
        %1249 = vmatprep.subr.bf16.mxu0 0
        %1250 = vmatpush1.bf16.msra.mxu0 0
        %1251 = vmatprep.subr.bf16.mxu0 0
        %1252 = vmatpush1.bf16.msra.mxu0 0
        %1253 = vmatprep.subr.bf16.mxu0 0
        %1254 = vmatpush1.bf16.msra.mxu0 0
        %1255 = vmatprep.subr.bf16.mxu0 0
        %1256 = vmatpush1.bf16.msra.mxu0 0
        %1257 = vmatprep.subr.bf16.mxu0 0
        %1258 = vmatpush1.bf16.msra.mxu0 %v1240
        %1259 = vmatprep.subr.bf16.mxu0 0
        %1260 = vmatpush1.bf16.msra.mxu0 %v1239
        %1261 = vmatprep.subr.bf16.mxu0 0
        %1262 = vmatpush1.bf16.msra.mxu0 %v1238
        %1263 = vmatprep.subr.bf16.mxu0 0
        %1264 = vmatpush1.bf16.msra.mxu0 %v1237
        %1265 = vmatprep.subr.bf16.mxu0 0
        %1266 = vmatpush2.bf16.msra.mxu0 0
        %1267 = vmatprep.subr.bf16.mxu0 0
        %1268 = vmatpush2.bf16.msra.mxu0 0
        %1269 = vmatprep.subr.bf16.mxu0 0
        %1270 = vmatpush2.bf16.msra.mxu0 0
        %1271 = vmatprep.subr.bf16.mxu0 0
        %1272 = vmatpush2.bf16.msra.mxu0 0
        %1273 = vmatprep.subr.bf16.mxu0 0
        %1274 = vmatpush2.bf16.msra.mxu0 0
        %1275 = vmatprep.subr.bf16.mxu0 0
        %1276 = vmatpush2.bf16.msra.mxu0 0
        %1277 = vmatprep.subr.bf16.mxu0 0
        %1278 = vmatpush2.bf16.msra.mxu0 0
        %1279 = vmatprep.subr.bf16.mxu0 0
        %1280 = vmatpush2.bf16.msra.mxu0 0
        %1281 = vmatprep.mubr.bf16.mxu0 0
        %1282 = vmatmul.mubr.bf16.gmra.mxu0 %v1247
        %v1283 = vpop.f32.mrf.mxu0
        %v1284 = vadd.f32 %v1219, %v1283
        %v1285 = vpop.f32.mrf.mxu0
        %v1286 = vpop.f32.mrf.mxu0
        %v1287 = vadd.f32 %v1219, %v1286
        %v1288 = vpop.f32.mrf.mxu0
        %1289 = vdwg.mxu0
        %v1290 = vmax.f32 %v1284, 0.0
        %v1291 = vmax.f32 %v1287, 0.0
        %v1292 = vpack.c.bf16 %v1291, %v1290
        %v1293 = vld [vmem:[%s7] sm:$0xf]
        %v1294 = vld [vmem:[%s7 + $0x4] sm:$0x3]
        %v1295 = vld [vmem:[%s8] sm:$0x1]
        %v1297 = vlaneseq
        %v1298 = vshrl.u32 %v1297, 7
        %v1299 = vsub.s32 0, %v1298
        %v1300 = vrot.slane %v1295, %v1299
        %v1304 = vunpack.c.l.b16 %v1293
        %v1305 = vunpack.c.l.b16 %v1294
        %v1306 = vpack.c.b16 %v1305, %v1304
        %vm1307 = vcmask 97280
        %v1309 = vsel %vm1307, %v1292, 0
        %vm1311 = vcmask 1045504
        %v1313 = vsel %vm1311, %v1306, 0
        %1315 = vmatprep.subr.bf16.mxu0 0
        %1316 = vmatpush1.bf16.msra.mxu0 0
        %1317 = vmatprep.subr.bf16.mxu0 0
        %1318 = vmatpush1.bf16.msra.mxu0 0
        %1319 = vmatprep.subr.bf16.mxu0 0
        %1320 = vmatpush1.bf16.msra.mxu0 0
        %1321 = vmatprep.subr.bf16.mxu0 0
        %1322 = vmatpush1.bf16.msra.mxu0 0
        %1323 = vmatprep.subr.bf16.mxu0 0
        %1324 = vmatpush1.bf16.msra.mxu0 0
        %1325 = vmatprep.subr.bf16.mxu0 0
        %1326 = vmatpush1.bf16.msra.mxu0 0
        %1327 = vmatprep.subr.bf16.mxu0 0
        %1328 = vmatpush1.bf16.msra.mxu0 0
        %1329 = vmatprep.subr.bf16.mxu0 0
        %1330 = vmatpush1.bf16.msra.mxu0 %v1313
        %1331 = vmatprep.subr.bf16.mxu0 0
        %1332 = vmatpush2.bf16.msra.mxu0 0
        %1333 = vmatprep.subr.bf16.mxu0 0
        %1334 = vmatpush2.bf16.msra.mxu0 0
        %1335 = vmatprep.subr.bf16.mxu0 0
        %1336 = vmatpush2.bf16.msra.mxu0 0
        %1337 = vmatprep.subr.bf16.mxu0 0
        %1338 = vmatpush2.bf16.msra.mxu0 0
        %1339 = vmatprep.subr.bf16.mxu0 0
        %1340 = vmatpush2.bf16.msra.mxu0 0
        %1341 = vmatprep.subr.bf16.mxu0 0
        %1342 = vmatpush2.bf16.msra.mxu0 0
        %1343 = vmatprep.subr.bf16.mxu0 0
        %1344 = vmatpush2.bf16.msra.mxu0 0
        %1345 = vmatprep.subr.bf16.mxu0 0
        %1346 = vmatpush2.bf16.msra.mxu0 0
        %1347 = vmatprep.mubr.bf16.mxu0 0
        %1348 = vmatmul.mubr.bf16.gmra.mxu0 %v1309
        %v1349 = vpop.f32.mrf.mxu0
        %v1350 = vadd.f32 %v1300, %v1349
        %v1351 = vpop.f32.mrf.mxu0
        %v1352 = vpop.f32.mrf.mxu0
        %v1353 = vadd.f32 %v1300, %v1352
        %v1354 = vpop.f32.mrf.mxu0
        %1355 = vdwg.mxu0
        %v1356 = vmax.f32 %v1350, 0.0
        %v1357 = vmax.f32 %v1353, 0.0
        %v1358 = vpack.c.bf16 %v1357, %v1356
        %v1359 = vld [vmem:[%s9] sm:$0xf]
        %v1360 = vld [vmem:[%s9 + $0x4] sm:$0x3]
        %v1361 = vld [vmem:[%s10] sm:$0x1]
        %v1363 = vlaneseq
        %v1364 = vshrl.u32 %v1363, 7
        %v1365 = vsub.s32 0, %v1364
        %v1366 = vrot.slane %v1361, %v1365
        %v1370 = vunpack.c.l.b16 %v1359
        %v1371 = vunpack.c.l.b16 %v1360
        %v1372 = vpack.c.b16 %v1371, %v1370
        %v1374 = vsel %vm1307, %v1358, 0
        %v1377 = vsel %vm1311, %v1372, 0
        %1379 = vmatprep.subr.bf16.mxu0 0
        %1380 = vmatpush1.bf16.msra.mxu0 0
        %1381 = vmatprep.subr.bf16.mxu0 0
        %1382 = vmatpush1.bf16.msra.mxu0 0
        %1383 = vmatprep.subr.bf16.mxu0 0
        %1384 = vmatpush1.bf16.msra.mxu0 0
        %1385 = vmatprep.subr.bf16.mxu0 0
        %1386 = vmatpush1.bf16.msra.mxu0 0
        %1387 = vmatprep.subr.bf16.mxu0 0
        %1388 = vmatpush1.bf16.msra.mxu0 0
        %1389 = vmatprep.subr.bf16.mxu0 0
        %1390 = vmatpush1.bf16.msra.mxu0 0
        %1391 = vmatprep.subr.bf16.mxu0 0
        %1392 = vmatpush1.bf16.msra.mxu0 0
        %1393 = vmatprep.subr.bf16.mxu0 0
        %1394 = vmatpush1.bf16.msra.mxu0 %v1377
        %1395 = vmatprep.subr.bf16.mxu0 0
        %1396 = vmatpush2.bf16.msra.mxu0 0
        %1397 = vmatprep.subr.bf16.mxu0 0
        %1398 = vmatpush2.bf16.msra.mxu0 0
        %1399 = vmatprep.subr.bf16.mxu0 0
        %1400 = vmatpush2.bf16.msra.mxu0 0
        %1401 = vmatprep.subr.bf16.mxu0 0
        %1402 = vmatpush2.bf16.msra.mxu0 0
        %1403 = vmatprep.subr.bf16.mxu0 0
        %1404 = vmatpush2.bf16.msra.mxu0 0
        %1405 = vmatprep.subr.bf16.mxu0 0
        %1406 = vmatpush2.bf16.msra.mxu0 0
        %1407 = vmatprep.subr.bf16.mxu0 0
        %1408 = vmatpush2.bf16.msra.mxu0 0
        %1409 = vmatprep.subr.bf16.mxu0 0
        %1410 = vmatpush2.bf16.msra.mxu0 0
        %1411 = vmatprep.mubr.bf16.mxu0 0
        %1412 = vmatmul.mubr.bf16.gmra.mxu0 %v1374
        %v1413 = vpop.f32.mrf.mxu0
        %v1414 = vadd.f32 %v1366, %v1413
        %v1415 = vpop.f32.mrf.mxu0
        %v1416 = vpop.f32.mrf.mxu0
        %v1417 = vadd.f32 %v1366, %v1416
        %v1418 = vpop.f32.mrf.mxu0
        %1419 = vdwg.mxu0
        %v1420 = vmax.f32 %v1414, 0.0
        %v1421 = vmax.f32 %v1417, 0.0
        %v1422 = vpack.c.bf16 %v1421, %v1420
        %v1423 = vld [vmem:[%s11] sm:$0xf]
        %v1424 = vld [vmem:[%s11 + $0x4] sm:$0xf]
        %v1425 = vld [vmem:[%s11 + $0x8] sm:$0xf]
        %v1426 = vld [vmem:[%s11 + $0xc] sm:$0xf]
        %v1427 = vld [vmem:[%s11 + $0x10] sm:$0xf]
        %v1428 = vld [vmem:[%s11 + $0x14] sm:$0xf]
        %v1429 = vld [vmem:[%s11 + $0x18] sm:$0xf]
        %v1430 = vld [vmem:[%s11 + $0x1c] sm:$0xf]
        %v1431 = vld [vmem:[%s12] sm:$0x1]
        %v1433 = vlaneseq
        %v1434 = vshrl.u32 %v1433, 7
        %v1435 = vsub.s32 0, %v1434
        %v1436 = vrot.slane %v1431, %v1435
        %v1446 = vunpack.c.l.b16 %v1423
        %v1447 = vunpack.c.l.b16 %v1424
        %v1448 = vunpack.c.l.b16 %v1425
        %v1449 = vunpack.c.l.b16 %v1426
        %v1450 = vunpack.c.l.b16 %v1427
        %v1451 = vunpack.c.l.b16 %v1428
        %v1452 = vunpack.c.l.b16 %v1429
        %v1453 = vunpack.c.l.b16 %v1430
        %v1454 = vpack.c.b16 %v1447, %v1446
        %v1455 = vpack.c.b16 %v1449, %v1448
        %v1456 = vpack.c.b16 %v1451, %v1450
        %v1457 = vpack.c.b16 %v1453, %v1452
        %v1463 = vsel %vm1245, %v1422, 0
        %1465 = vmatprep.subr.bf16.mxu0 0
        %1466 = vmatpush1.bf16.msra.mxu0 0
        %1467 = vmatprep.subr.bf16.mxu0 0
        %1468 = vmatpush1.bf16.msra.mxu0 0
        %1469 = vmatprep.subr.bf16.mxu0 0
        %1470 = vmatpush1.bf16.msra.mxu0 0
        %1471 = vmatprep.subr.bf16.mxu0 0
        %1472 = vmatpush1.bf16.msra.mxu0 0
        %1473 = vmatprep.subr.bf16.mxu0 0
        %1474 = vmatpush1.bf16.msra.mxu0 %v1457
        %1475 = vmatprep.subr.bf16.mxu0 0
        %1476 = vmatpush1.bf16.msra.mxu0 %v1456
        %1477 = vmatprep.subr.bf16.mxu0 0
        %1478 = vmatpush1.bf16.msra.mxu0 %v1455
        %1479 = vmatprep.subr.bf16.mxu0 0
        %1480 = vmatpush1.bf16.msra.mxu0 %v1454
        %1481 = vmatprep.subr.bf16.mxu0 0
        %1482 = vmatpush2.bf16.msra.mxu0 0
        %1483 = vmatprep.subr.bf16.mxu0 0
        %1484 = vmatpush2.bf16.msra.mxu0 0
        %1485 = vmatprep.subr.bf16.mxu0 0
        %1486 = vmatpush2.bf16.msra.mxu0 0
        %1487 = vmatprep.subr.bf16.mxu0 0
        %1488 = vmatpush2.bf16.msra.mxu0 0
        %1489 = vmatprep.subr.bf16.mxu0 0
        %1490 = vmatpush2.bf16.msra.mxu0 0
        %1491 = vmatprep.subr.bf16.mxu0 0
        %1492 = vmatpush2.bf16.msra.mxu0 0
        %1493 = vmatprep.subr.bf16.mxu0 0
        %1494 = vmatpush2.bf16.msra.mxu0 0
        %1495 = vmatprep.subr.bf16.mxu0 0
        %1496 = vmatpush2.bf16.msra.mxu0 0
        %1497 = vmatprep.mubr.bf16.mxu0 0
        %1498 = vmatmul.mubr.bf16.gmra.mxu0 %v1463
        %v1499 = vpop.f32.mrf.mxu0
        %v1500 = vadd.f32 %v1436, %v1499
        %v1501 = vpop.f32.mrf.mxu0
        %v1502 = vpop.f32.mrf.mxu0
        %v1503 = vadd.f32 %v1436, %v1502
        %v1504 = vpop.f32.mrf.mxu0
        %1505 = vdwg.mxu0
        %v1506 = vmax.f32 %v1500, 0.0
        %v1507 = vmax.f32 %v1503, 0.0
        %v1508 = vpack.c.bf16 %v1507, %v1506
        %v1509 = vld [vmem:[%s13] sm:$0xff]
        %v1510 = vld [vmem:[%s13 + $0x8] sm:$0xff]
        %v1511 = vld [vmem:[%s13 + $0x10] sm:$0xff]
        %v1512 = vld [vmem:[%s13 + $0x18] sm:$0xf]
        %v1513 = vld [vmem:[%s13 + $0x1c] sm:$0xff]
        %v1514 = vld [vmem:[%s13 + $0x24] sm:$0xff]
        %v1515 = vld [vmem:[%s13 + $0x2c] sm:$0xff]
        %v1516 = vld [vmem:[%s13 + $0x34] sm:$0xf]
        %v1517 = vld [vmem:[%s13 + $0x38] sm:$0xff]
        %v1518 = vld [vmem:[%s13 + $0x40] sm:$0xff]
        %v1519 = vld [vmem:[%s13 + $0x48] sm:$0xff]
        %v1520 = vld [vmem:[%s13 + $0x50] sm:$0xf]
        %v1521 = vld [vmem:[%s13 + $0x54] sm:$0xff]
        %v1522 = vld [vmem:[%s13 + $0x5c] sm:$0xff]
        %v1523 = vld [vmem:[%s13 + $0x64] sm:$0xff]
        %v1524 = vld [vmem:[%s13 + $0x6c] sm:$0xf]
        %v1525 = vld [vmem:[%s13 + $0x70] sm:$0xff]
        %v1526 = vld [vmem:[%s13 + $0x78] sm:$0xff]
        %v1527 = vld [vmem:[%s13 + $0x80] sm:$0xff]
        %v1528 = vld [vmem:[%s13 + $0x88] sm:$0xf]
        %v1529 = vld [vmem:[%s13 + $0x8c] sm:$0xff]
        %v1530 = vld [vmem:[%s13 + $0x94] sm:$0xff]
        %v1531 = vld [vmem:[%s13 + $0x9c] sm:$0xff]
        %v1532 = vld [vmem:[%s13 + $0xa4] sm:$0xf]
        %v1533 = vld [vmem:[%s13 + $0xa8] sm:$0xff]
        %v1534 = vld [vmem:[%s13 + $0xb0] sm:$0xff]
        %v1535 = vld [vmem:[%s13 + $0xb8] sm:$0xff]
        %v1536 = vld [vmem:[%s13 + $0xc0] sm:$0xf]
        %v1537 = vld [vmem:[%s13 + $0xc4] sm:$0xff]
        %v1538 = vld [vmem:[%s13 + $0xcc] sm:$0xff]
        %v1539 = vld [vmem:[%s13 + $0xd4] sm:$0xff]
        %v1540 = vld [vmem:[%s13 + $0xdc] sm:$0xf]
        %v1541 = vld [vmem:[%s13 + $0xe0] sm:$0xff]
        %v1542 = vld [vmem:[%s13 + $0xe8] sm:$0xff]
        %v1543 = vld [vmem:[%s13 + $0xf0] sm:$0xff]
        %v1544 = vld [vmem:[%s13 + $0xf8] sm:$0xf]
        %v1545 = vld [vmem:[%s13 + $0xfc] sm:$0xff]
        %v1546 = vld [vmem:[%s13 + $0x104] sm:$0xff]
        %v1547 = vld [vmem:[%s13 + $0x10c] sm:$0xff]
        %v1548 = vld [vmem:[%s13 + $0x114] sm:$0xf]
        %v1549 = vld [vmem:[%s13 + $0x118] sm:$0xff]
        %v1550 = vld [vmem:[%s13 + $0x120] sm:$0xff]
        %v1551 = vld [vmem:[%s13 + $0x128] sm:$0xff]
        %v1552 = vld [vmem:[%s13 + $0x130] sm:$0xf]
        %v1553 = vld [vmem:[%s13 + $0x134] sm:$0xff]
        %v1554 = vld [vmem:[%s13 + $0x13c] sm:$0xff]
        %v1555 = vld [vmem:[%s13 + $0x144] sm:$0xff]
        %v1556 = vld [vmem:[%s13 + $0x14c] sm:$0xf]
        %v1557 = vld [vmem:[%s13 + $0x150] sm:$0xff]
        %v1558 = vld [vmem:[%s13 + $0x158] sm:$0xff]
        %v1559 = vld [vmem:[%s13 + $0x160] sm:$0xff]
        %v1560 = vld [vmem:[%s13 + $0x168] sm:$0xf]
        %v1561 = vld [vmem:[%s13 + $0x16c] sm:$0xff]
        %v1562 = vld [vmem:[%s13 + $0x174] sm:$0xff]
        %v1563 = vld [vmem:[%s13 + $0x17c] sm:$0xff]
        %v1564 = vld [vmem:[%s13 + $0x184] sm:$0xf]
        %v1565 = vld [vmem:[%s13 + $0x188] sm:$0xff]
        %v1566 = vld [vmem:[%s13 + $0x190] sm:$0xff]
        %v1567 = vld [vmem:[%s13 + $0x198] sm:$0xff]
        %v1568 = vld [vmem:[%s13 + $0x1a0] sm:$0xf]
        %v1569 = vld [vmem:[%s13 + $0x1a4] sm:$0xff]
        %v1570 = vld [vmem:[%s13 + $0x1ac] sm:$0xff]
        %v1571 = vld [vmem:[%s13 + $0x1b4] sm:$0xff]
        %v1572 = vld [vmem:[%s13 + $0x1bc] sm:$0xf]
        %v1573 = vld [vmem:[%s14] sm:$0x7f]
        %v1575 = vlaneseq
        %v1576 = vshrl.u32 %v1575, 7
        %v1577 = vsub.s32 0, %v1576
        %v1578 = vrot.slane %v1573, %v1577
        %v1579 = vlaneseq
        %v1580 = vshrl.u32 %v1579, 7
        %v1581 = vsub.s32 1, %v1580
        %v1582 = vrot.slane %v1573, %v1581
        %v1583 = vlaneseq
        %v1584 = vshrl.u32 %v1583, 7
        %v1585 = vsub.s32 2, %v1584
        %v1586 = vrot.slane %v1573, %v1585
        %v1587 = vlaneseq
        %v1588 = vshrl.u32 %v1587, 7
        %v1589 = vsub.s32 3, %v1588
        %v1590 = vrot.slane %v1573, %v1589
        %v1591 = vlaneseq
        %v1592 = vshrl.u32 %v1591, 7
        %v1593 = vsub.s32 4, %v1592
        %v1594 = vrot.slane %v1573, %v1593
        %v1595 = vlaneseq
        %v1596 = vshrl.u32 %v1595, 7
        %v1597 = vsub.s32 5, %v1596
        %v1598 = vrot.slane %v1573, %v1597
        %v1599 = vlaneseq
        %v1600 = vshrl.u32 %v1599, 7
        %v1601 = vsub.s32 6, %v1600
        %v1602 = vrot.slane %v1573, %v1601
        %v1674 = vunpack.c.l.b16 %v1509
        %v1675 = vunpack.c.h.b16 %v1509
        %v1676 = vunpack.c.l.b16 %v1510
        %v1677 = vunpack.c.h.b16 %v1510
        %v1678 = vunpack.c.l.b16 %v1511
        %v1679 = vunpack.c.h.b16 %v1511
        %v1680 = vunpack.c.l.b16 %v1512
        %v1681 = vunpack.c.l.b16 %v1513
        %v1682 = vunpack.c.h.b16 %v1513
        %v1683 = vunpack.c.l.b16 %v1514
        %v1684 = vunpack.c.h.b16 %v1514
        %v1685 = vunpack.c.l.b16 %v1515
        %v1686 = vunpack.c.h.b16 %v1515
        %v1687 = vunpack.c.l.b16 %v1516
        %v1688 = vunpack.c.l.b16 %v1517
        %v1689 = vunpack.c.h.b16 %v1517
        %v1690 = vunpack.c.l.b16 %v1518
        %v1691 = vunpack.c.h.b16 %v1518
        %v1692 = vunpack.c.l.b16 %v1519
        %v1693 = vunpack.c.h.b16 %v1519
        %v1694 = vunpack.c.l.b16 %v1520
        %v1695 = vunpack.c.l.b16 %v1521
        %v1696 = vunpack.c.h.b16 %v1521
        %v1697 = vunpack.c.l.b16 %v1522
        %v1698 = vunpack.c.h.b16 %v1522
        %v1699 = vunpack.c.l.b16 %v1523
        %v1700 = vunpack.c.h.b16 %v1523
        %v1701 = vunpack.c.l.b16 %v1524
        %v1702 = vunpack.c.l.b16 %v1525
        %v1703 = vunpack.c.h.b16 %v1525
        %v1704 = vunpack.c.l.b16 %v1526
        %v1705 = vunpack.c.h.b16 %v1526
        %v1706 = vunpack.c.l.b16 %v1527
        %v1707 = vunpack.c.h.b16 %v1527
        %v1708 = vunpack.c.l.b16 %v1528
        %v1709 = vunpack.c.l.b16 %v1529
        %v1710 = vunpack.c.h.b16 %v1529
        %v1711 = vunpack.c.l.b16 %v1530
        %v1712 = vunpack.c.h.b16 %v1530
        %v1713 = vunpack.c.l.b16 %v1531
        %v1714 = vunpack.c.h.b16 %v1531
        %v1715 = vunpack.c.l.b16 %v1532
        %v1716 = vunpack.c.l.b16 %v1533
        %v1717 = vunpack.c.h.b16 %v1533
        %v1718 = vunpack.c.l.b16 %v1534
        %v1719 = vunpack.c.h.b16 %v1534
        %v1720 = vunpack.c.l.b16 %v1535
        %v1721 = vunpack.c.h.b16 %v1535
        %v1722 = vunpack.c.l.b16 %v1536
        %v1723 = vunpack.c.l.b16 %v1537
        %v1724 = vunpack.c.h.b16 %v1537
        %v1725 = vunpack.c.l.b16 %v1538
        %v1726 = vunpack.c.h.b16 %v1538
        %v1727 = vunpack.c.l.b16 %v1539
        %v1728 = vunpack.c.h.b16 %v1539
        %v1729 = vunpack.c.l.b16 %v1540
        %v1730 = vunpack.c.l.b16 %v1541
        %v1731 = vunpack.c.h.b16 %v1541
        %v1732 = vunpack.c.l.b16 %v1542
        %v1733 = vunpack.c.h.b16 %v1542
        %v1734 = vunpack.c.l.b16 %v1543
        %v1735 = vunpack.c.h.b16 %v1543
        %v1736 = vunpack.c.l.b16 %v1544
        %v1737 = vunpack.c.l.b16 %v1545
        %v1738 = vunpack.c.h.b16 %v1545
        %v1739 = vunpack.c.l.b16 %v1546
        %v1740 = vunpack.c.h.b16 %v1546
        %v1741 = vunpack.c.l.b16 %v1547
        %v1742 = vunpack.c.h.b16 %v1547
        %v1743 = vunpack.c.l.b16 %v1548
        %v1744 = vunpack.c.l.b16 %v1549
        %v1745 = vunpack.c.h.b16 %v1549
        %v1746 = vunpack.c.l.b16 %v1550
        %v1747 = vunpack.c.h.b16 %v1550
        %v1748 = vunpack.c.l.b16 %v1551
        %v1749 = vunpack.c.h.b16 %v1551
        %v1750 = vunpack.c.l.b16 %v1552
        %v1751 = vunpack.c.l.b16 %v1553
        %v1752 = vunpack.c.h.b16 %v1553
        %v1753 = vunpack.c.l.b16 %v1554
        %v1754 = vunpack.c.h.b16 %v1554
        %v1755 = vunpack.c.l.b16 %v1555
        %v1756 = vunpack.c.h.b16 %v1555
        %v1757 = vunpack.c.l.b16 %v1556
        %v1758 = vunpack.c.l.b16 %v1557
        %v1759 = vunpack.c.h.b16 %v1557
        %v1760 = vunpack.c.l.b16 %v1558
        %v1761 = vunpack.c.h.b16 %v1558
        %v1762 = vunpack.c.l.b16 %v1559
        %v1763 = vunpack.c.h.b16 %v1559
        %v1764 = vunpack.c.l.b16 %v1560
        %v1765 = vunpack.c.l.b16 %v1561
        %v1766 = vunpack.c.h.b16 %v1561
        %v1767 = vunpack.c.l.b16 %v1562
        %v1768 = vunpack.c.h.b16 %v1562
        %v1769 = vunpack.c.l.b16 %v1563
        %v1770 = vunpack.c.h.b16 %v1563
        %v1771 = vunpack.c.l.b16 %v1564
        %v1772 = vunpack.c.l.b16 %v1565
        %v1773 = vunpack.c.h.b16 %v1565
        %v1774 = vunpack.c.l.b16 %v1566
        %v1775 = vunpack.c.h.b16 %v1566
        %v1776 = vunpack.c.l.b16 %v1567
        %v1777 = vunpack.c.h.b16 %v1567
        %v1778 = vunpack.c.l.b16 %v1568
        %v1779 = vunpack.c.l.b16 %v1569
        %v1780 = vunpack.c.h.b16 %v1569
        %v1781 = vunpack.c.l.b16 %v1570
        %v1782 = vunpack.c.h.b16 %v1570
        %v1783 = vunpack.c.l.b16 %v1571
        %v1784 = vunpack.c.h.b16 %v1571
        %v1785 = vunpack.c.l.b16 %v1572
        %v1786 = vpack.c.b16 %v1681, %v1674
        %v1787 = vpack.c.b16 %v1682, %v1675
        %v1788 = vpack.c.b16 %v1683, %v1676
        %v1789 = vpack.c.b16 %v1684, %v1677
        %v1790 = vpack.c.b16 %v1685, %v1678
        %v1791 = vpack.c.b16 %v1686, %v1679
        %v1792 = vpack.c.b16 %v1687, %v1680
        %v1793 = vpack.c.b16 %v1695, %v1688
        %v1794 = vpack.c.b16 %v1696, %v1689
        %v1795 = vpack.c.b16 %v1697, %v1690
        %v1796 = vpack.c.b16 %v1698, %v1691
        %v1797 = vpack.c.b16 %v1699, %v1692
        %v1798 = vpack.c.b16 %v1700, %v1693
        %v1799 = vpack.c.b16 %v1701, %v1694
        %v1800 = vpack.c.b16 %v1709, %v1702
        %v1801 = vpack.c.b16 %v1710, %v1703
        %v1802 = vpack.c.b16 %v1711, %v1704
        %v1803 = vpack.c.b16 %v1712, %v1705
        %v1804 = vpack.c.b16 %v1713, %v1706
        %v1805 = vpack.c.b16 %v1714, %v1707
        %v1806 = vpack.c.b16 %v1715, %v1708
        %v1807 = vpack.c.b16 %v1723, %v1716
        %v1808 = vpack.c.b16 %v1724, %v1717
        %v1809 = vpack.c.b16 %v1725, %v1718
        %v1810 = vpack.c.b16 %v1726, %v1719
        %v1811 = vpack.c.b16 %v1727, %v1720
        %v1812 = vpack.c.b16 %v1728, %v1721
        %v1813 = vpack.c.b16 %v1729, %v1722
        %v1814 = vpack.c.b16 %v1737, %v1730
        %v1815 = vpack.c.b16 %v1738, %v1731
        %v1816 = vpack.c.b16 %v1739, %v1732
        %v1817 = vpack.c.b16 %v1740, %v1733
        %v1818 = vpack.c.b16 %v1741, %v1734
        %v1819 = vpack.c.b16 %v1742, %v1735
        %v1820 = vpack.c.b16 %v1743, %v1736
        %v1821 = vpack.c.b16 %v1751, %v1744
        %v1822 = vpack.c.b16 %v1752, %v1745
        %v1823 = vpack.c.b16 %v1753, %v1746
        %v1824 = vpack.c.b16 %v1754, %v1747
        %v1825 = vpack.c.b16 %v1755, %v1748
        %v1826 = vpack.c.b16 %v1756, %v1749
        %v1827 = vpack.c.b16 %v1757, %v1750
        %v1828 = vpack.c.b16 %v1765, %v1758
        %v1829 = vpack.c.b16 %v1766, %v1759
        %v1830 = vpack.c.b16 %v1767, %v1760
        %v1831 = vpack.c.b16 %v1768, %v1761
        %v1832 = vpack.c.b16 %v1769, %v1762
        %v1833 = vpack.c.b16 %v1770, %v1763
        %v1834 = vpack.c.b16 %v1771, %v1764
        %v1835 = vpack.c.b16 %v1779, %v1772
        %v1836 = vpack.c.b16 %v1780, %v1773
        %v1837 = vpack.c.b16 %v1781, %v1774
        %v1838 = vpack.c.b16 %v1782, %v1775
        %v1839 = vpack.c.b16 %v1783, %v1776
        %v1840 = vpack.c.b16 %v1784, %v1777
        %v1841 = vpack.c.b16 %v1785, %v1778
        %1898 = vmatprep.subr.bf16.mxu0 %v1836
        %1899 = vmatpush1.bf16.msra.mxu0 %v1835
        %1900 = vmatprep.subr.bf16.mxu0 %v1829
        %1901 = vmatpush1.bf16.msra.mxu0 %v1828
        %1902 = vmatprep.subr.bf16.mxu0 %v1822
        %1903 = vmatpush1.bf16.msra.mxu0 %v1821
        %1904 = vmatprep.subr.bf16.mxu0 %v1815
        %1905 = vmatpush1.bf16.msra.mxu0 %v1814
        %1906 = vmatprep.subr.bf16.mxu0 %v1808
        %1907 = vmatpush1.bf16.msra.mxu0 %v1807
        %1908 = vmatprep.subr.bf16.mxu0 %v1801
        %1909 = vmatpush1.bf16.msra.mxu0 %v1800
        %1910 = vmatprep.subr.bf16.mxu0 %v1794
        %1911 = vmatpush1.bf16.msra.mxu0 %v1793
        %1912 = vmatprep.subr.bf16.mxu0 %v1787
        %1913 = vmatpush1.bf16.msra.mxu0 %v1786
        %1914 = vmatprep.subr.bf16.mxu0 0
        %1915 = vmatpush2.bf16.msra.mxu0 0
        %1916 = vmatprep.subr.bf16.mxu0 0
        %1917 = vmatpush2.bf16.msra.mxu0 0
        %1918 = vmatprep.subr.bf16.mxu0 0
        %1919 = vmatpush2.bf16.msra.mxu0 0
        %1920 = vmatprep.subr.bf16.mxu0 0
        %1921 = vmatpush2.bf16.msra.mxu0 0
        %1922 = vmatprep.subr.bf16.mxu0 0
        %1923 = vmatpush2.bf16.msra.mxu0 0
        %1924 = vmatprep.subr.bf16.mxu0 0
        %1925 = vmatpush2.bf16.msra.mxu0 0
        %1926 = vmatprep.subr.bf16.mxu0 0
        %1927 = vmatpush2.bf16.msra.mxu0 0
        %1928 = vmatprep.subr.bf16.mxu0 0
        %1929 = vmatpush2.bf16.msra.mxu0 0
        %1930 = vmatprep.mubr.bf16.mxu0 0
        %1931 = vmatmul.mubr.bf16.gmra.mxu0 %v1508
        %v1932 = vpop.f32.mrf.mxu0
        %v1933 = vadd.f32 %v1578, %v1932
        %v1934 = vpop.f32.mrf.mxu0
        %v1935 = vadd.f32 %v1582, %v1934
        %v1936 = vpop.f32.mrf.mxu0
        %v1937 = vadd.f32 %v1578, %v1936
        %v1938 = vpop.f32.mrf.mxu0
        %v1939 = vadd.f32 %v1582, %v1938
        %1940 = vdwg.mxu0
        %1941 = vmatprep.subr.bf16.mxu0 %v1838
        %1942 = vmatpush1.bf16.msra.mxu0 %v1837
        %1943 = vmatprep.subr.bf16.mxu0 %v1831
        %1944 = vmatpush1.bf16.msra.mxu0 %v1830
        %1945 = vmatprep.subr.bf16.mxu0 %v1824
        %1946 = vmatpush1.bf16.msra.mxu0 %v1823
        %1947 = vmatprep.subr.bf16.mxu0 %v1817
        %1948 = vmatpush1.bf16.msra.mxu0 %v1816
        %1949 = vmatprep.subr.bf16.mxu0 %v1810
        %1950 = vmatpush1.bf16.msra.mxu0 %v1809
        %1951 = vmatprep.subr.bf16.mxu0 %v1803
        %1952 = vmatpush1.bf16.msra.mxu0 %v1802
        %1953 = vmatprep.subr.bf16.mxu0 %v1796
        %1954 = vmatpush1.bf16.msra.mxu0 %v1795
        %1955 = vmatprep.subr.bf16.mxu0 %v1789
        %1956 = vmatpush1.bf16.msra.mxu0 %v1788
        %1957 = vmatprep.subr.bf16.mxu0 0
        %1958 = vmatpush2.bf16.msra.mxu0 0
        %1959 = vmatprep.subr.bf16.mxu0 0
        %1960 = vmatpush2.bf16.msra.mxu0 0
        %1961 = vmatprep.subr.bf16.mxu0 0
        %1962 = vmatpush2.bf16.msra.mxu0 0
        %1963 = vmatprep.subr.bf16.mxu0 0
        %1964 = vmatpush2.bf16.msra.mxu0 0
        %1965 = vmatprep.subr.bf16.mxu0 0
        %1966 = vmatpush2.bf16.msra.mxu0 0
        %1967 = vmatprep.subr.bf16.mxu0 0
        %1968 = vmatpush2.bf16.msra.mxu0 0
        %1969 = vmatprep.subr.bf16.mxu0 0
        %1970 = vmatpush2.bf16.msra.mxu0 0
        %1971 = vmatprep.subr.bf16.mxu0 0
        %1972 = vmatpush2.bf16.msra.mxu0 0
        %1973 = vmatprep.mubr.bf16.mxu0 0
        %1974 = vmatmul.mubr.bf16.gmra.mxu0 %v1508
        %v1975 = vpop.f32.mrf.mxu0
        %v1976 = vadd.f32 %v1586, %v1975
        %v1977 = vpop.f32.mrf.mxu0
        %v1978 = vadd.f32 %v1590, %v1977
        %v1979 = vpop.f32.mrf.mxu0
        %v1980 = vadd.f32 %v1586, %v1979
        %v1981 = vpop.f32.mrf.mxu0
        %v1982 = vadd.f32 %v1590, %v1981
        %1983 = vdwg.mxu0
        %1984 = vmatprep.subr.bf16.mxu0 %v1840
        %1985 = vmatpush1.bf16.msra.mxu0 %v1839
        %1986 = vmatprep.subr.bf16.mxu0 %v1833
        %1987 = vmatpush1.bf16.msra.mxu0 %v1832
        %1988 = vmatprep.subr.bf16.mxu0 %v1826
        %1989 = vmatpush1.bf16.msra.mxu0 %v1825
        %1990 = vmatprep.subr.bf16.mxu0 %v1819
        %1991 = vmatpush1.bf16.msra.mxu0 %v1818
        %1992 = vmatprep.subr.bf16.mxu0 %v1812
        %1993 = vmatpush1.bf16.msra.mxu0 %v1811
        %1994 = vmatprep.subr.bf16.mxu0 %v1805
        %1995 = vmatpush1.bf16.msra.mxu0 %v1804
        %1996 = vmatprep.subr.bf16.mxu0 %v1798
        %1997 = vmatpush1.bf16.msra.mxu0 %v1797
        %1998 = vmatprep.subr.bf16.mxu0 %v1791
        %1999 = vmatpush1.bf16.msra.mxu0 %v1790
        %2000 = vmatprep.subr.bf16.mxu0 0
        %2001 = vmatpush2.bf16.msra.mxu0 0
        %2002 = vmatprep.subr.bf16.mxu0 0
        %2003 = vmatpush2.bf16.msra.mxu0 0
        %2004 = vmatprep.subr.bf16.mxu0 0
        %2005 = vmatpush2.bf16.msra.mxu0 0
        %2006 = vmatprep.subr.bf16.mxu0 0
        %2007 = vmatpush2.bf16.msra.mxu0 0
        %2008 = vmatprep.subr.bf16.mxu0 0
        %2009 = vmatpush2.bf16.msra.mxu0 0
        %2010 = vmatprep.subr.bf16.mxu0 0
        %2011 = vmatpush2.bf16.msra.mxu0 0
        %2012 = vmatprep.subr.bf16.mxu0 0
        %2013 = vmatpush2.bf16.msra.mxu0 0
        %2014 = vmatprep.subr.bf16.mxu0 0
        %2015 = vmatpush2.bf16.msra.mxu0 0
        %2016 = vmatprep.mubr.bf16.mxu0 0
        %2017 = vmatmul.mubr.bf16.gmra.mxu0 %v1508
        %v2018 = vpop.f32.mrf.mxu0
        %v2019 = vadd.f32 %v1594, %v2018
        %v2020 = vpop.f32.mrf.mxu0
        %v2021 = vadd.f32 %v1598, %v2020
        %v2022 = vpop.f32.mrf.mxu0
        %v2023 = vadd.f32 %v1594, %v2022
        %v2024 = vpop.f32.mrf.mxu0
        %v2025 = vadd.f32 %v1598, %v2024
        %2026 = vdwg.mxu0
        %2027 = vmatprep.subr.bf16.mxu0 0
        %2028 = vmatpush1.bf16.msra.mxu0 %v1841
        %2029 = vmatprep.subr.bf16.mxu0 0
        %2030 = vmatpush1.bf16.msra.mxu0 %v1834
        %2031 = vmatprep.subr.bf16.mxu0 0
        %2032 = vmatpush1.bf16.msra.mxu0 %v1827
        %2033 = vmatprep.subr.bf16.mxu0 0
        %2034 = vmatpush1.bf16.msra.mxu0 %v1820
        %2035 = vmatprep.subr.bf16.mxu0 0
        %2036 = vmatpush1.bf16.msra.mxu0 %v1813
        %2037 = vmatprep.subr.bf16.mxu0 0
        %2038 = vmatpush1.bf16.msra.mxu0 %v1806
        %2039 = vmatprep.subr.bf16.mxu0 0
        %2040 = vmatpush1.bf16.msra.mxu0 %v1799
        %2041 = vmatprep.subr.bf16.mxu0 0
        %2042 = vmatpush1.bf16.msra.mxu0 %v1792
        %2043 = vmatprep.subr.bf16.mxu0 0
        %2044 = vmatpush2.bf16.msra.mxu0 0
        %2045 = vmatprep.subr.bf16.mxu0 0
        %2046 = vmatpush2.bf16.msra.mxu0 0
        %2047 = vmatprep.subr.bf16.mxu0 0
        %2048 = vmatpush2.bf16.msra.mxu0 0
        %2049 = vmatprep.subr.bf16.mxu0 0
        %2050 = vmatpush2.bf16.msra.mxu0 0
        %2051 = vmatprep.subr.bf16.mxu0 0
        %2052 = vmatpush2.bf16.msra.mxu0 0
        %2053 = vmatprep.subr.bf16.mxu0 0
        %2054 = vmatpush2.bf16.msra.mxu0 0
        %2055 = vmatprep.subr.bf16.mxu0 0
        %2056 = vmatpush2.bf16.msra.mxu0 0
        %2057 = vmatprep.subr.bf16.mxu0 0
        %2058 = vmatpush2.bf16.msra.mxu0 0
        %2059 = vmatprep.mubr.bf16.mxu0 0
        %2060 = vmatmul.mubr.bf16.gmra.mxu0 %v1508
        %v2061 = vpop.f32.mrf.mxu0
        %v2062 = vadd.f32 %v1602, %v2061
        %v2063 = vpop.f32.mrf.mxu0
        %v2064 = vpop.f32.mrf.mxu0
        %v2065 = vadd.f32 %v1602, %v2064
        %v2066 = vpop.f32.mrf.mxu0
        %2067 = vdwg.mxu0
        %v2068 = vtanh.pop %v1933
        %v2069 = vtanh.pop %v1935
        %v2070 = vtanh.pop %v1976
        %v2071 = vtanh.pop %v1978
        %v2072 = vtanh.pop %v2019
        %v2073 = vtanh.pop %v2021
        %v2074 = vtanh.pop %v2062
        %v2075 = vtanh.pop %v1937
        %v2076 = vtanh.pop %v1939
        %v2077 = vtanh.pop %v1980
        %v2078 = vtanh.pop %v1982
        %v2079 = vtanh.pop %v2023
        %v2080 = vtanh.pop %v2025
        %v2081 = vtanh.pop %v2065
        %v2082 = vpack.c.bf16 %v2075, %v2068
        %v2083 = vpack.c.bf16 %v2076, %v2069
        %v2084 = vpack.c.bf16 %v2077, %v2070
        %v2085 = vpack.c.bf16 %v2078, %v2071
        %v2086 = vpack.c.bf16 %v2079, %v2072
        %v2087 = vpack.c.bf16 %v2080, %v2073
        %v2088 = vpack.c.bf16 %v2081, %v2074
        %v2096 = vunpack.c.l.b16 %v2082
        %v2097 = vunpack.c.l.b16 %v2083
        %v2098 = vunpack.c.l.b16 %v2084
        %v2099 = vunpack.c.l.b16 %v2085
        %v2100 = vunpack.c.l.b16 %v2086
        %v2101 = vunpack.c.l.b16 %v2087
        %v2102 = vunpack.c.l.b16 %v2088
        %v2103 = vunpack.c.h.b16 %v2082
        %v2104 = vunpack.c.h.b16 %v2083
        %v2105 = vunpack.c.h.b16 %v2084
        %v2106 = vunpack.c.h.b16 %v2085
        %v2107 = vunpack.c.h.b16 %v2086
        %v2108 = vunpack.c.h.b16 %v2087
        %v2109 = vunpack.c.h.b16 %v2088
        %v2110 = vpack.c.b16 %v2097, %v2096
        %v2111 = vpack.c.b16 %v2099, %v2098
        %v2112 = vpack.c.b16 %v2101, %v2100
        %v2113 = vpack.c.b16 %v2102, %v2102
        %v2114 = vpack.c.b16 %v2104, %v2103
        %v2115 = vpack.c.b16 %v2106, %v2105
        %v2116 = vpack.c.b16 %v2108, %v2107
        %v2117 = vpack.c.b16 %v2109, %v2109
        %2126 = vst [vmem:[%s490] sm:$0xff] %v2110
        %2127 = vst [vmem:[%s490 + $0x8] sm:$0xff] %v2111
        %2128 = vst [vmem:[%s490 + $0x10] sm:$0xff] %v2112
        %vm2129 = vcmask 125952
        %2130 = vst.msk [vmem:[%s490 + $0x18] sm:$0xf] %vm2129, %v2113
        %2131 = vst [vmem:[%s490 + $0x1c] sm:$0xff] %v2114
        %2132 = vst [vmem:[%s490 + $0x24] sm:$0xff] %v2115
        %2133 = vst [vmem:[%s490 + $0x2c] sm:$0xff] %v2116
        %2134 = vst.msk [vmem:[%s490 + $0x34] sm:$0xf] %vm2129, %v2117
        %s2135 = sand.u32 %s357, 1
        %s2136 = scalar_lea.sflag [#allocation3], %s2135
        %s2137 = sand.u32 %s357, 1
        %s2138 = smul.addr %s2137, 56
        %s2139 = scalar_lea.vmem [#allocation2], %s2138
        // Predicated region
        $region81: #{autoencoder_forward.1} parent=79 // pred_check
          %p2140 = pneg %p367
        $region82: #{autoencoder_forward.1} parent=79 // pred_check_branch
          %2142 = sbr.rel (%p2140) target = $region84
        $region83: #{autoencoder_forward.1} parent=79 // pred_region
          %s2143 = smul.u32 2, %s29
          %s2145 = ssub.s32 896, 896
          %2146 = vsyncadd %s2136, %s2145
          %s2147 = smul.addr %s2143, 7
          %s2148 = smul.addr %s2147, 64
          %s2149 = scalar_lea.hbm %s15, %s2148
          %s2150 = sshll.u32 %s2139, 4
          %s2151 = int_to_ptr.vmem [resolvable:$true] %s2150
          %2156 = dma.vmem_to_hbm [thread:$0]  %s2151, 896, %s2149, %s2136, 448, 448, 28
        $region84: #{autoencoder_forward.1} parent=79 // pred_fallthru
          _
      $region80: #{autoencoder_forward.1} parent=5 // pred_fallthru
        _
      %p2157 = scmp.le.s32.totalorder 2, %s24
      // Predicated region
      $region85: #{autoencoder_forward.1} parent=5 // pred_check
        %p2158 = pneg %p2157
      $region86: #{autoencoder_forward.1} parent=5 // pred_check_branch
        %2160 = sbr.rel (%p2158) target = $region88
      $region87: #{autoencoder_forward.1} parent=5 // pred_region
        %s2161 = ssub.s32 %s24, 2
        // Predicated region
        $region89: #{autoencoder_forward.1} parent=87 // pred_check
          %p2162 = pneg %p373
        $region90: #{autoencoder_forward.1} parent=87 // pred_check_branch
          %2164 = sbr.rel (%p2162) target = $region92
        $region91: #{autoencoder_forward.1} parent=87 // pred_region
          %s2165 = sand.u32 %s358, 1
          %s2166 = scalar_lea.sflag [#allocation3], %s2165
          %s2167 = sand.u32 %s358, 1
          %s2168 = smul.addr %s2167, 56
          %s2169 = scalar_lea.vmem [#allocation2], %s2168
          %2170 = dma.done %s2166, 896
        $region92: #{autoencoder_forward.1} parent=87 // pred_fallthru
          _
      $region88: #{autoencoder_forward.1} parent=5 // pred_fallthru
        _
    $region6: #{autoencoder_forward.1} parent=1 // loop_footer
      %s28 = sadd.s32 1, %s24
    $region7: #{autoencoder_forward.1} parent=1 // loop_footer_branch
      %23 = sbr.rel target = $region3
    $region8: #{autoencoder_forward.1} parent=1 // loop_exit
      _
    %2171 = vsyncpa [#allocation3], 1
    %s2172 = scalar_lea.sflag [#allocation3], 1
    %2173 = vsyncpa %s2172, 1

</llo_original>
